<compile_context>
chip_gen: v7x
topology: tpu7x:2x2x1
jax: 0.10.0
libtpu: 0.0.40
codegen_flags: <defaults>
</compile_context>

<pallas_src>
import functools

import numpy as np
import jax
import jax.numpy as jnp
from jax.experimental import pallas as pl
from jax.experimental.pallas import tpu as pltpu


# ----------------------------------------------------------------------------
# 2D sincos positional embedding, version=(2, 5)  (numpy glue, buffer init)
# ----------------------------------------------------------------------------
def _get_1d_sincos_pos_embed_from_grid_new(embed_dim, pos):
    omega = np.arange(embed_dim // 2, dtype=np.float32)
    omega /= embed_dim / 2.0
    omega = 1.0 / 10000 ** omega
    out = np.einsum("hw,d->hwd", pos, omega)
    return np.concatenate([np.sin(out), np.cos(out)], axis=-1)


def get_2d_sincos_pos_embed(embed_dim, image_size):
    grid_h_size, grid_w_size = image_size
    grid_h = np.arange(grid_h_size, dtype=np.float32)
    grid_w = np.arange(grid_w_size, dtype=np.float32)
    grid = np.meshgrid(grid_w, grid_h)  # matches reference ordering
    grid = np.stack(grid, axis=0)
    emb_h = _get_1d_sincos_pos_embed_from_grid_new(embed_dim // 2, grid[0])
    emb_w = _get_1d_sincos_pos_embed_from_grid_new(embed_dim // 2, grid[1])
    return np.concatenate([emb_h, emb_w], axis=-1)  # (H, W, D)


# ----------------------------------------------------------------------------
# Pallas kernel
# ----------------------------------------------------------------------------
def _layernorm(x, g, b, eps=1e-6):  # module uses eps=1e-6 (DEFAULT_LN)
    mu = jnp.mean(x, axis=-1, keepdims=True)
    var = jnp.mean((x - mu) ** 2, axis=-1, keepdims=True)
    return (x - mu) * jax.lax.rsqrt(var + eps) * g + b


def resampler_kernel(plen_ref,                       # scalar prefetch: (bs,) int32
                     x_ref, pos_ref, query_ref,
                     lnq_g_ref, lnq_b_ref, lnkv_g_ref, lnkv_b_ref,
                     wq_ref, bq_ref, wk_ref, bk_ref, wv_ref, bv_ref,
                     wo_ref, bo_ref, lnp_g_ref, lnp_b_ref, proj_ref,
                     o_ref, *, num_heads):
    b = pl.program_id(0)
    x = x_ref[0]                                     # (S, D) f32
    S, D = x.shape
    H = num_heads
    dh = D // H
    scale = 1.0 / (dh ** 0.5)
    bf16 = jnp.bfloat16

    # Additive key-padding mask built in-kernel (no (bs,1,S) HBM stream).
    # Note: a fully-masked sample (patch_len == 0) would give uniform attention
    # rather than NaN; valid inputs always have patch_len >= 1.
    n_valid = plen_ref[b]
    col = jax.lax.broadcasted_iota(jnp.int32, (1, S), 1)
    mask = jnp.where(col < n_valid, 0.0, -1e9).astype(jnp.float32)    # (1, S)

    # LayerNorms in f32.
    xk = _layernorm(x, lnkv_g_ref[...], lnkv_b_ref[...])              # (S, D)
    q = _layernorm(query_ref[...], lnq_g_ref[...], lnq_b_ref[...])    # (Q, D)
    key_in = xk + pos_ref[0].astype(jnp.float32)                      # (S, D)

    # bf16 activations for the MXU; accumulation stays f32.
    q_bf = q.astype(bf16)
    key_bf = key_in.astype(bf16)
    val_bf = xk.astype(bf16)

    # Per-head projections from host-pre-split, pre-transposed bf16 weights:
    # leading-dim ref indexing only (no lane-offset slices, no .T in-kernel).
    q_heads, k_heads, v_heads = [], [], []
    for h in range(H):
        q_heads.append(jnp.dot(q_bf, wq_ref[h], preferred_element_type=jnp.float32))
        k_heads.append(jnp.dot(key_bf, wk_ref[h], preferred_element_type=jnp.float32))
        v_heads.append(jnp.dot(val_bf, wv_ref[h], preferred_element_type=jnp.float32))
    qp = (jnp.stack(q_heads, axis=0) + bq_ref[...]) * scale            # (H, Q, dh)
    kp = jnp.stack(k_heads, axis=0) + bk_ref[...]                      # (H, S, dh)
    vp = jnp.stack(v_heads, axis=0) + bv_ref[...]                      # (H, S, dh)

    # Head-batched attention (single batched dot_general per step, head axis
    # is the leading / non-lane dim).
    s = jnp.einsum("hqd,hkd->hqk", qp.astype(bf16), kp.astype(bf16),
                   preferred_element_type=jnp.float32)                 # (H, Q, S)
    s = s + mask[None, :, :]
    s = s - jnp.max(s, axis=-1, keepdims=True)
    p = jnp.exp(s)
    p = p * pl.reciprocal(jnp.sum(p, axis=-1, keepdims=True), approx=True)
    attn = jnp.einsum("hqk,hkd->hqd", p.astype(bf16), vp.astype(bf16),
                      preferred_element_type=jnp.float32)              # (H, Q, dh)

    # out_proj folded per head and reduced over the (major) head axis:
    # avoids any lane-dim concatenation of head outputs.
    out = jnp.einsum("hqd,hde->hqe", attn.astype(bf16), wo_ref[...],
                     preferred_element_type=jnp.float32)               # (H, Q, D)
    out = jnp.sum(out, axis=0) + bo_ref[...]                           # (Q, D)

    out = _layernorm(out, lnp_g_ref[...], lnp_b_ref[...])
    out = jnp.dot(out.astype(bf16), proj_ref[...],
                  preferred_element_type=jnp.float32)
    o_ref[0] = out


# ----------------------------------------------------------------------------
# Host-side parameter prep (free, once): pre-transpose + split per head + bf16
# ----------------------------------------------------------------------------
def _prep_params(params, num_heads):
    D = params["wq"].shape[0]
    dh = D // num_heads
    bf = jnp.bfloat16

    def head_rhs(w):            # torch (out,in) -> (H, D_in, dh): x @ head_rhs[h]
        return jnp.transpose(w.T.reshape(D, num_heads, dh), (1, 0, 2)).astype(bf)

    def head_bias(bvec):        # (1, D) -> (H, 1, dh)
        return bvec.reshape(num_heads, 1, dh).astype(jnp.float32)

    return dict(
        query=params["query"].astype(jnp.float32),
        lnq_g=params["lnq_g"], lnq_b=params["lnq_b"],
        lnkv_g=params["lnkv_g"], lnkv_b=params["lnkv_b"],
        wq=head_rhs(params["wq"]), bq=head_bias(params["bq"]),
        wk=head_rhs(params["wk"]), bk=head_bias(params["bk"]),
        wv=head_rhs(params["wv"]), bv=head_bias(params["bv"]),
        wo=params["wo"].T.reshape(num_heads, dh, D).astype(bf),
        bo=params["bo"].astype(jnp.float32),
        lnp_g=params["lnp_g"], lnp_b=params["lnp_b"],
        proj=params["proj"].astype(bf),
    )


# ----------------------------------------------------------------------------
# Wrapper
# ----------------------------------------------------------------------------
def resampler_forward(x, tgt_sizes, params, num_heads):
    bs, S, D = x.shape
    Q = params["query"].shape[0]
    dh = D // num_heads

    # Host glue (same role as the python loop in the torch forward): gather/pad
    # per-sample sincos pos embeds (bf16 halves this HBM stream) + patch lens.
    pos_cache = params["pos_embed"]
    pos_list = []
    plen = np.zeros((bs,), np.int32)
    for i in range(bs):
        h, w = int(tgt_sizes[i, 0]), int(tgt_sizes[i, 1])
        n = h * w
        plen[i] = n
        pe = pos_cache[:h, :w, :].reshape(n, D).astype(jnp.bfloat16)
        pos_list.append(jnp.pad(pe, ((0, S - n), (0, 0))))
    pos = jnp.stack(pos_list)                        # (bs, S, D) bf16
    plen = jnp.asarray(plen)                         # (bs,) int32, scalar-prefetched

    p = _prep_params(params, num_heads)
    kernel = functools.partial(resampler_kernel, num_heads=num_heads)

    # Weights/query use constant index_maps -> DMA'd once, resident across grid.
    def const(shape):
        zeros = tuple(0 for _ in shape)
        return pl.BlockSpec(shape, lambda b, p_, _z=zeros: _z)

    in_specs = [
        pl.BlockSpec((1, S, D), lambda b, p_: (b, 0, 0)),     # x
        pl.BlockSpec((1, S, D), lambda b, p_: (b, 0, 0)),     # pos (bf16)
        const((Q, D)),                                        # query
        const((1, D)), const((1, D)),                         # ln_q gamma/beta
        const((1, D)), const((1, D)),                         # ln_kv gamma/beta
        const((num_heads, D, dh)), const((num_heads, 1, dh)),  # Wq, bq
        const((num_heads, D, dh)), const((num_heads, 1, dh)),  # Wk, bk
        const((num_heads, D, dh)), const((num_heads, 1, dh)),  # Wv, bv
        const((num_heads, dh, D)), const((1, D)),              # Wo, bo
        const((1, D)), const((1, D)),                          # ln_post gamma/beta
        const((D, D)),                                         # proj
    ]

    grid_spec = pltpu.PrefetchScalarGridSpec(
        num_scalar_prefetch=1,
        grid=(bs,),
        in_specs=in_specs,
        out_specs=pl.BlockSpec((1, Q, D), lambda b, p_: (b, 0, 0)),
    )

    fn = pl.pallas_call(
        kernel,
        out_shape=jax.ShapeDtypeStruct((bs, Q, D), jnp.float32),
        grid_spec=grid_spec,
        compiler_params=pltpu.CompilerParams(
            dimension_semantics=("parallel",)),   # v7x: both TCs busy for bs>=2
    )

    return fn(plen, x.astype(jnp.float32), pos,
              p["query"], p["lnq_g"], p["lnq_b"], p["lnkv_g"], p["lnkv_b"],
              p["wq"], p["bq"], p["wk"], p["bk"], p["wv"], p["bv"],
              p["wo"], p["bo"], p["lnp_g"], p["lnp_b"], p["proj"])


# ----------------------------------------------------------------------------
# Pure-JAX reference implementing the same mixed-precision recipe
# (bf16 matmul inputs, f32 accumulation / layernorm / softmax).
# ----------------------------------------------------------------------------
def reference_forward(x, tgt_sizes, params, num_heads):
    bs, S, D = x.shape
    H = num_heads
    dh = D // H
    scale = 1.0 / (dh ** 0.5)
    bf, f32 = jnp.bfloat16, jnp.float32

    def ln(v, g, b, eps=1e-6):
        mu = jnp.mean(v, -1, keepdims=True)
        var = jnp.mean((v - mu) ** 2, -1, keepdims=True)
        return (v - mu) / jnp.sqrt(var + eps) * g + b

    def mm(a, w):
        return jnp.dot(a.astype(bf), w.astype(bf), preferred_element_type=f32)

    pos_cache = params["pos_embed"]
    q_ln = ln(params["query"], params["lnq_g"], params["lnq_b"])
    outs = []
    for i in range(bs):
        hh, ww = int(tgt_sizes[i, 0]), int(tgt_sizes[i, 1])
        n = hh * ww
        pe = pos_cache[:hh, :ww, :].reshape(n, D).astype(bf).astype(f32)
        pe = jnp.pad(pe, ((0, S - n), (0, 0)))
        mask = jnp.where(jnp.arange(S) < n, 0.0, -1e9)[None, :]     # (1, S)
        xk = ln(x[i], params["lnkv_g"], params["lnkv_b"])
        key_in = xk + pe
        qp = (mm(q_ln, params["wq"].T) + params["bq"]) * scale
        kp = mm(key_in, params["wk"].T) + params["bk"]
        vp = mm(xk, params["wv"].T) + params["bv"]
        qh = qp.reshape(-1, H, dh).transpose(1, 0, 2)
        kh = kp.reshape(S, H, dh).transpose(1, 0, 2)
        vh = vp.reshape(S, H, dh).transpose(1, 0, 2)
        s = jnp.einsum("hqd,hkd->hqk", qh.astype(bf), kh.astype(bf),
                       preferred_element_type=f32) + mask[None]
        pr = jax.nn.softmax(s, axis=-1)
        a = jnp.einsum("hqk,hkd->hqd", pr.astype(bf), vh.astype(bf),
                       preferred_element_type=f32)
        a = a.transpose(1, 0, 2).reshape(-1, D)
        o = mm(a, params["wo"].T) + params["bo"]
        o = ln(o, params["lnp_g"], params["lnp_b"])
        o = mm(o, params["proj"])
        outs.append(o)
    return jnp.stack(outs)


# ----------------------------------------------------------------------------
# Deterministic synthetic parameter init
# ----------------------------------------------------------------------------
def init_params(key, num_queries, embed_dim, max_size):
    D = embed_dim
    ks = jax.random.split(key, 6)
    tn = lambda k, shape, std: std * jax.random.truncated_normal(
        k, -2.0, 2.0, shape, jnp.float32)
    in_proj_w = tn(ks[1], (3 * D, D), 0.02)
    return {
        "query": tn(ks[0], (num_queries, D), 0.02),
        "wq": in_proj_w[:D], "bq": jnp.zeros((1, D), jnp.float32),
        "wk": in_proj_w[D:2 * D], "bk": jnp.zeros((1, D), jnp.float32),
        "wv": in_proj_w[2 * D:], "bv": jnp.zeros((1, D), jnp.float32),
        "wo": tn(ks[2], (D, D), 0.02), "bo": jnp.zeros((1, D), jnp.float32),
        "lnq_g": jnp.ones((1, D), jnp.float32), "lnq_b": jnp.zeros((1, D), jnp.float32),
        "lnkv_g": jnp.ones((1, D), jnp.float32), "lnkv_b": jnp.zeros((1, D), jnp.float32),
        "lnp_g": jnp.ones((1, D), jnp.float32), "lnp_b": jnp.zeros((1, D), jnp.float32),
        "proj": (D ** -0.5) * jax.random.normal(ks[3], (D, D), jnp.float32),
        "pos_embed": jnp.asarray(get_2d_sincos_pos_embed(D, max_size),
                                 dtype=jnp.float32),
    }


# ----------------------------------------------------------------------------
if __name__ == "__main__":
    num_queries = 8
    embed_dim = 32
    num_heads = 4
    max_size = (8, 8)
    bs = 2

    key = jax.random.PRNGKey(0)
    k_params, k_x = jax.random.split(key)
    params = init_params(k_params, num_queries, embed_dim, max_size)

    # tgt_sizes: (bs, 2) with h*w <= max_patch_len; x seq dim == max_patch_len
    tgt_sizes = np.array([[3, 4], [4, 4]], dtype=np.int32)
    max_patch_len = int((tgt_sizes[:, 0] * tgt_sizes[:, 1]).max())  # 16
    x = jax.random.normal(k_x, (bs, max_patch_len, embed_dim), jnp.float32)

    out = jax.block_until_ready(resampler_forward(x, tgt_sizes, params, num_heads))
    ref = jax.block_until_ready(reference_forward(x, tgt_sizes, params, num_heads))

    assert out.shape == (bs, num_queries, embed_dim)
    # Tolerance covers approx-reciprocal softmax + MXU vs XLA accumulation order
    # on the shared bf16/f32 mixed-precision recipe.
    np.testing.assert_allclose(np.asarray(out), np.asarray(ref),
                               rtol=2e-2, atol=2e-2)
    print("KERNEL_OK")
</pallas_src>

<mosaic_0001>
module attributes {stable_mosaic.version = 11 : i64} {
  func.func @resampler_kernel(%arg0: i32, %arg1: memref<2xi32, #tpu.memory_space<smem>>, %arg2: memref<1x16x32xf32, #tpu.memory_space<vmem>>, %arg3: memref<1x16x32xbf16, #tpu.memory_space<vmem>>, %arg4: memref<8x32xf32, #tpu.memory_space<vmem>>, %arg5: memref<1x32xf32, #tpu.memory_space<vmem>>, %arg6: memref<1x32xf32, #tpu.memory_space<vmem>>, %arg7: memref<1x32xf32, #tpu.memory_space<vmem>>, %arg8: memref<1x32xf32, #tpu.memory_space<vmem>>, %arg9: memref<4x32x8xbf16, #tpu.memory_space<vmem>>, %arg10: memref<4x1x8xf32, #tpu.memory_space<vmem>>, %arg11: memref<4x32x8xbf16, #tpu.memory_space<vmem>>, %arg12: memref<4x1x8xf32, #tpu.memory_space<vmem>>, %arg13: memref<4x32x8xbf16, #tpu.memory_space<vmem>>, %arg14: memref<4x1x8xf32, #tpu.memory_space<vmem>>, %arg15: memref<4x8x32xbf16, #tpu.memory_space<vmem>>, %arg16: memref<1x32xf32, #tpu.memory_space<vmem>>, %arg17: memref<1x32xf32, #tpu.memory_space<vmem>>, %arg18: memref<1x32xf32, #tpu.memory_space<vmem>>, %arg19: memref<32x32xbf16, #tpu.memory_space<vmem>>, %arg20: memref<1x8x32xf32, #tpu.memory_space<vmem>>) attributes {dimension_semantics = [#tpu.dimension_semantics<parallel>], iteration_bounds = array<i64: 2>, scalar_prefetch = 1 : i64, scratch_operands = 0 : i64, tpu.core_type = #tpu.core_type<tc>, window_params = [{transform_indices = @transform_0, window_bounds = array<i64: 1, 16, 32>}, {transform_indices = @transform_1, window_bounds = array<i64: 1, 16, 32>}, {pipeline_mode = #tpu.pipeline_mode<synchronous>, transform_indices = @transform_2, window_bounds = array<i64: 8, 32>}, {pipeline_mode = #tpu.pipeline_mode<synchronous>, transform_indices = @transform_3, window_bounds = array<i64: 1, 32>}, {pipeline_mode = #tpu.pipeline_mode<synchronous>, transform_indices = @transform_4, window_bounds = array<i64: 1, 32>}, {pipeline_mode = #tpu.pipeline_mode<synchronous>, transform_indices = @transform_5, window_bounds = array<i64: 1, 32>}, {pipeline_mode = #tpu.pipeline_mode<synchronous>, transform_indices = @transform_6, window_bounds = array<i64: 1, 32>}, {pipeline_mode = #tpu.pipeline_mode<synchronous>, transform_indices = @transform_7, window_bounds = array<i64: 4, 32, 8>}, {pipeline_mode = #tpu.pipeline_mode<synchronous>, transform_indices = @transform_8, window_bounds = array<i64: 4, 1, 8>}, {pipeline_mode = #tpu.pipeline_mode<synchronous>, transform_indices = @transform_9, window_bounds = array<i64: 4, 32, 8>}, {pipeline_mode = #tpu.pipeline_mode<synchronous>, transform_indices = @transform_10, window_bounds = array<i64: 4, 1, 8>}, {pipeline_mode = #tpu.pipeline_mode<synchronous>, transform_indices = @transform_11, window_bounds = array<i64: 4, 32, 8>}, {pipeline_mode = #tpu.pipeline_mode<synchronous>, transform_indices = @transform_12, window_bounds = array<i64: 4, 1, 8>}, {pipeline_mode = #tpu.pipeline_mode<synchronous>, transform_indices = @transform_13, window_bounds = array<i64: 4, 8, 32>}, {pipeline_mode = #tpu.pipeline_mode<synchronous>, transform_indices = @transform_14, window_bounds = array<i64: 1, 32>}, {pipeline_mode = #tpu.pipeline_mode<synchronous>, transform_indices = @transform_15, window_bounds = array<i64: 1, 32>}, {pipeline_mode = #tpu.pipeline_mode<synchronous>, transform_indices = @transform_16, window_bounds = array<i64: 1, 32>}, {pipeline_mode = #tpu.pipeline_mode<synchronous>, transform_indices = @transform_17, window_bounds = array<i64: 32, 32>}, {transform_indices = @transform_18, window_bounds = array<i64: 1, 8, 32>}]} {
    %c0 = arith.constant 0 : index
    %c0_0 = arith.constant 0 : index
    %c0_1 = arith.constant 0 : index
    %0 = vector.load %arg2[%c0, %c0_0, %c0_1] : memref<1x16x32xf32, #tpu.memory_space<vmem>>, vector<1x16x32xf32>
    %1 = vector.shape_cast %0 : vector<1x16x32xf32> to vector<16x32xf32>
    %2 = arith.index_cast %arg0 : i32 to index
    %3 = memref.load %arg1[%2] : memref<2xi32, #tpu.memory_space<smem>>
    %4 = tpu.iota {dimensions = array<i32: 1>} : vector<1x16xi32>
    %5 = vector.broadcast %3 : i32 to vector<1x16xi32>
    %6 = arith.cmpi slt, %4, %5 : vector<1x16xi32>
    %cst = arith.constant 0.000000e+00 : f32
    %cst_2 = arith.constant -1.000000e+09 : f32
    %7 = vector.broadcast %cst : f32 to vector<1x16xf32>
    %8 = vector.broadcast %cst_2 : f32 to vector<1x16xf32>
    %9 = arith.select %6, %7, %8 : vector<1x16xi1>, vector<1x16xf32>
    %c0_3 = arith.constant 0 : index
    %c0_4 = arith.constant 0 : index
    %10 = vector.load %arg7[%c0_3, %c0_4] : memref<1x32xf32, #tpu.memory_space<vmem>>, vector<1x32xf32>
    %c0_5 = arith.constant 0 : index
    %c0_6 = arith.constant 0 : index
    %11 = vector.load %arg8[%c0_5, %c0_6] : memref<1x32xf32, #tpu.memory_space<vmem>>, vector<1x32xf32>
    %cst_7 = arith.constant dense<0.000000e+00> : vector<16xf32>
    %12 = vector.multi_reduction <add>, %1, %cst_7 [1] : vector<16x32xf32> to vector<16xf32>
    %13 = vector.shape_cast %12 : vector<16xf32> to vector<16x1xf32>
    %cst_8 = arith.constant 3.200000e+01 : f32
    %14 = vector.broadcast %cst_8 : f32 to vector<16x1xf32>
    %15 = arith.divf %13, %14 : vector<16x1xf32>
    %16 = vector.broadcast %15 : vector<16x1xf32> to vector<16x32xf32>
    %17 = arith.subf %1, %16 : vector<16x32xf32>
    %18 = arith.mulf %17, %17 : vector<16x32xf32>
    %cst_9 = arith.constant dense<0.000000e+00> : vector<16xf32>
    %19 = vector.multi_reduction <add>, %18, %cst_9 [1] : vector<16x32xf32> to vector<16xf32>
    %20 = vector.shape_cast %19 : vector<16xf32> to vector<16x1xf32>
    %cst_10 = arith.constant 3.200000e+01 : f32
    %21 = vector.broadcast %cst_10 : f32 to vector<16x1xf32>
    %22 = arith.divf %20, %21 : vector<16x1xf32>
    %23 = vector.broadcast %15 : vector<16x1xf32> to vector<16x32xf32>
    %24 = arith.subf %1, %23 : vector<16x32xf32>
    %cst_11 = arith.constant 9.99999997E-7 : f32
    %25 = vector.broadcast %cst_11 : f32 to vector<16x1xf32>
    %26 = arith.addf %22, %25 : vector<16x1xf32>
    %27 = math.rsqrt %26 : vector<16x1xf32>
    %28 = vector.broadcast %27 : vector<16x1xf32> to vector<16x32xf32>
    %29 = arith.mulf %24, %28 : vector<16x32xf32>
    %30 = vector.broadcast %10 : vector<1x32xf32> to vector<16x32xf32>
    %31 = arith.mulf %29, %30 : vector<16x32xf32>
    %32 = vector.broadcast %11 : vector<1x32xf32> to vector<16x32xf32>
    %33 = arith.addf %31, %32 : vector<16x32xf32>
    %c0_12 = arith.constant 0 : index
    %c0_13 = arith.constant 0 : index
    %34 = vector.load %arg4[%c0_12, %c0_13] : memref<8x32xf32, #tpu.memory_space<vmem>>, vector<8x32xf32>
    %c0_14 = arith.constant 0 : index
    %c0_15 = arith.constant 0 : index
    %35 = vector.load %arg5[%c0_14, %c0_15] : memref<1x32xf32, #tpu.memory_space<vmem>>, vector<1x32xf32>
    %c0_16 = arith.constant 0 : index
    %c0_17 = arith.constant 0 : index
    %36 = vector.load %arg6[%c0_16, %c0_17] : memref<1x32xf32, #tpu.memory_space<vmem>>, vector<1x32xf32>
    %cst_18 = arith.constant dense<0.000000e+00> : vector<8xf32>
    %37 = vector.multi_reduction <add>, %34, %cst_18 [1] : vector<8x32xf32> to vector<8xf32>
    %38 = vector.shape_cast %37 : vector<8xf32> to vector<8x1xf32>
    %cst_19 = arith.constant 3.200000e+01 : f32
    %39 = vector.broadcast %cst_19 : f32 to vector<8x1xf32>
    %40 = arith.divf %38, %39 : vector<8x1xf32>
    %41 = vector.broadcast %40 : vector<8x1xf32> to vector<8x32xf32>
    %42 = arith.subf %34, %41 : vector<8x32xf32>
    %43 = arith.mulf %42, %42 : vector<8x32xf32>
    %cst_20 = arith.constant dense<0.000000e+00> : vector<8xf32>
    %44 = vector.multi_reduction <add>, %43, %cst_20 [1] : vector<8x32xf32> to vector<8xf32>
    %45 = vector.shape_cast %44 : vector<8xf32> to vector<8x1xf32>
    %cst_21 = arith.constant 3.200000e+01 : f32
    %46 = vector.broadcast %cst_21 : f32 to vector<8x1xf32>
    %47 = arith.divf %45, %46 : vector<8x1xf32>
    %48 = vector.broadcast %40 : vector<8x1xf32> to vector<8x32xf32>
    %49 = arith.subf %34, %48 : vector<8x32xf32>
    %cst_22 = arith.constant 9.99999997E-7 : f32
    %50 = vector.broadcast %cst_22 : f32 to vector<8x1xf32>
    %51 = arith.addf %47, %50 : vector<8x1xf32>
    %52 = math.rsqrt %51 : vector<8x1xf32>
    %53 = vector.broadcast %52 : vector<8x1xf32> to vector<8x32xf32>
    %54 = arith.mulf %49, %53 : vector<8x32xf32>
    %55 = vector.broadcast %35 : vector<1x32xf32> to vector<8x32xf32>
    %56 = arith.mulf %54, %55 : vector<8x32xf32>
    %57 = vector.broadcast %36 : vector<1x32xf32> to vector<8x32xf32>
    %58 = arith.addf %56, %57 : vector<8x32xf32>
    %c0_23 = arith.constant 0 : index
    %c0_24 = arith.constant 0 : index
    %c0_25 = arith.constant 0 : index
    %59 = vector.load %arg3[%c0_23, %c0_24, %c0_25] : memref<1x16x32xbf16, #tpu.memory_space<vmem>>, vector<1x16x32xbf16>
    %60 = vector.shape_cast %59 : vector<1x16x32xbf16> to vector<16x32xbf16>
    %61 = arith.extf %60 : vector<16x32xbf16> to vector<16x32xf32>
    %62 = arith.addf %33, %61 : vector<16x32xf32>
    %63 = arith.truncf %58 : vector<8x32xf32> to vector<8x32xbf16>
    %64 = arith.truncf %62 : vector<16x32xf32> to vector<16x32xbf16>
    %65 = arith.truncf %33 : vector<16x32xf32> to vector<16x32xbf16>
    %c0_26 = arith.constant 0 : index
    %c0_27 = arith.constant 0 : index
    %c0_28 = arith.constant 0 : index
    %66 = vector.load %arg9[%c0_26, %c0_27, %c0_28] : memref<4x32x8xbf16, #tpu.memory_space<vmem>>, vector<1x32x8xbf16>
    %67 = vector.shape_cast %66 : vector<1x32x8xbf16> to vector<32x8xbf16>
    %cst_29 = arith.constant dense<0.000000e+00> : vector<8x8xf32>
    %68 = tpu.matmul %63, %67, %cst_29 {dimension_numbers = #tpu.dot_dimension_numbers<[1], [0], [0], [1], [0, 0, 1, 1], [], []>} : vector<8x32xbf16>, vector<32x8xbf16>, vector<8x8xf32> -> vector<8x8xf32>
    %c0_30 = arith.constant 0 : index
    %c0_31 = arith.constant 0 : index
    %c0_32 = arith.constant 0 : index
    %69 = vector.load %arg11[%c0_30, %c0_31, %c0_32] : memref<4x32x8xbf16, #tpu.memory_space<vmem>>, vector<1x32x8xbf16>
    %70 = vector.shape_cast %69 : vector<1x32x8xbf16> to vector<32x8xbf16>
    %cst_33 = arith.constant dense<0.000000e+00> : vector<16x8xf32>
    %71 = tpu.matmul %64, %70, %cst_33 {dimension_numbers = #tpu.dot_dimension_numbers<[1], [0], [0], [1], [0, 0, 1, 1], [], []>} : vector<16x32xbf16>, vector<32x8xbf16>, vector<16x8xf32> -> vector<16x8xf32>
    %c0_34 = arith.constant 0 : index
    %c0_35 = arith.constant 0 : index
    %c0_36 = arith.constant 0 : index
    %72 = vector.load %arg13[%c0_34, %c0_35, %c0_36] : memref<4x32x8xbf16, #tpu.memory_space<vmem>>, vector<1x32x8xbf16>
    %73 = vector.shape_cast %72 : vector<1x32x8xbf16> to vector<32x8xbf16>
    %cst_37 = arith.constant dense<0.000000e+00> : vector<16x8xf32>
    %74 = tpu.matmul %65, %73, %cst_37 {dimension_numbers = #tpu.dot_dimension_numbers<[1], [0], [0], [1], [0, 0, 1, 1], [], []>} : vector<16x32xbf16>, vector<32x8xbf16>, vector<16x8xf32> -> vector<16x8xf32>
    %c1 = arith.constant 1 : index
    %c0_38 = arith.constant 0 : index
    %c0_39 = arith.constant 0 : index
    %75 = vector.load %arg9[%c1, %c0_38, %c0_39] : memref<4x32x8xbf16, #tpu.memory_space<vmem>>, vector<1x32x8xbf16>
    %76 = vector.shape_cast %75 : vector<1x32x8xbf16> to vector<32x8xbf16>
    %cst_40 = arith.constant dense<0.000000e+00> : vector<8x8xf32>
    %77 = tpu.matmul %63, %76, %cst_40 {dimension_numbers = #tpu.dot_dimension_numbers<[1], [0], [0], [1], [0, 0, 1, 1], [], []>} : vector<8x32xbf16>, vector<32x8xbf16>, vector<8x8xf32> -> vector<8x8xf32>
    %c1_41 = arith.constant 1 : index
    %c0_42 = arith.constant 0 : index
    %c0_43 = arith.constant 0 : index
    %78 = vector.load %arg11[%c1_41, %c0_42, %c0_43] : memref<4x32x8xbf16, #tpu.memory_space<vmem>>, vector<1x32x8xbf16>
    %79 = vector.shape_cast %78 : vector<1x32x8xbf16> to vector<32x8xbf16>
    %cst_44 = arith.constant dense<0.000000e+00> : vector<16x8xf32>
    %80 = tpu.matmul %64, %79, %cst_44 {dimension_numbers = #tpu.dot_dimension_numbers<[1], [0], [0], [1], [0, 0, 1, 1], [], []>} : vector<16x32xbf16>, vector<32x8xbf16>, vector<16x8xf32> -> vector<16x8xf32>
    %c1_45 = arith.constant 1 : index
    %c0_46 = arith.constant 0 : index
    %c0_47 = arith.constant 0 : index
    %81 = vector.load %arg13[%c1_45, %c0_46, %c0_47] : memref<4x32x8xbf16, #tpu.memory_space<vmem>>, vector<1x32x8xbf16>
    %82 = vector.shape_cast %81 : vector<1x32x8xbf16> to vector<32x8xbf16>
    %cst_48 = arith.constant dense<0.000000e+00> : vector<16x8xf32>
    %83 = tpu.matmul %65, %82, %cst_48 {dimension_numbers = #tpu.dot_dimension_numbers<[1], [0], [0], [1], [0, 0, 1, 1], [], []>} : vector<16x32xbf16>, vector<32x8xbf16>, vector<16x8xf32> -> vector<16x8xf32>
    %c2 = arith.constant 2 : index
    %c0_49 = arith.constant 0 : index
    %c0_50 = arith.constant 0 : index
    %84 = vector.load %arg9[%c2, %c0_49, %c0_50] : memref<4x32x8xbf16, #tpu.memory_space<vmem>>, vector<1x32x8xbf16>
    %85 = vector.shape_cast %84 : vector<1x32x8xbf16> to vector<32x8xbf16>
    %cst_51 = arith.constant dense<0.000000e+00> : vector<8x8xf32>
    %86 = tpu.matmul %63, %85, %cst_51 {dimension_numbers = #tpu.dot_dimension_numbers<[1], [0], [0], [1], [0, 0, 1, 1], [], []>} : vector<8x32xbf16>, vector<32x8xbf16>, vector<8x8xf32> -> vector<8x8xf32>
    %c2_52 = arith.constant 2 : index
    %c0_53 = arith.constant 0 : index
    %c0_54 = arith.constant 0 : index
    %87 = vector.load %arg11[%c2_52, %c0_53, %c0_54] : memref<4x32x8xbf16, #tpu.memory_space<vmem>>, vector<1x32x8xbf16>
    %88 = vector.shape_cast %87 : vector<1x32x8xbf16> to vector<32x8xbf16>
    %cst_55 = arith.constant dense<0.000000e+00> : vector<16x8xf32>
    %89 = tpu.matmul %64, %88, %cst_55 {dimension_numbers = #tpu.dot_dimension_numbers<[1], [0], [0], [1], [0, 0, 1, 1], [], []>} : vector<16x32xbf16>, vector<32x8xbf16>, vector<16x8xf32> -> vector<16x8xf32>
    %c2_56 = arith.constant 2 : index
    %c0_57 = arith.constant 0 : index
    %c0_58 = arith.constant 0 : index
    %90 = vector.load %arg13[%c2_56, %c0_57, %c0_58] : memref<4x32x8xbf16, #tpu.memory_space<vmem>>, vector<1x32x8xbf16>
    %91 = vector.shape_cast %90 : vector<1x32x8xbf16> to vector<32x8xbf16>
    %cst_59 = arith.constant dense<0.000000e+00> : vector<16x8xf32>
    %92 = tpu.matmul %65, %91, %cst_59 {dimension_numbers = #tpu.dot_dimension_numbers<[1], [0], [0], [1], [0, 0, 1, 1], [], []>} : vector<16x32xbf16>, vector<32x8xbf16>, vector<16x8xf32> -> vector<16x8xf32>
    %c3 = arith.constant 3 : index
    %c0_60 = arith.constant 0 : index
    %c0_61 = arith.constant 0 : index
    %93 = vector.load %arg9[%c3, %c0_60, %c0_61] : memref<4x32x8xbf16, #tpu.memory_space<vmem>>, vector<1x32x8xbf16>
    %94 = vector.shape_cast %93 : vector<1x32x8xbf16> to vector<32x8xbf16>
    %cst_62 = arith.constant dense<0.000000e+00> : vector<8x8xf32>
    %95 = tpu.matmul %63, %94, %cst_62 {dimension_numbers = #tpu.dot_dimension_numbers<[1], [0], [0], [1], [0, 0, 1, 1], [], []>} : vector<8x32xbf16>, vector<32x8xbf16>, vector<8x8xf32> -> vector<8x8xf32>
    %c3_63 = arith.constant 3 : index
    %c0_64 = arith.constant 0 : index
    %c0_65 = arith.constant 0 : index
    %96 = vector.load %arg11[%c3_63, %c0_64, %c0_65] : memref<4x32x8xbf16, #tpu.memory_space<vmem>>, vector<1x32x8xbf16>
    %97 = vector.shape_cast %96 : vector<1x32x8xbf16> to vector<32x8xbf16>
    %cst_66 = arith.constant dense<0.000000e+00> : vector<16x8xf32>
    %98 = tpu.matmul %64, %97, %cst_66 {dimension_numbers = #tpu.dot_dimension_numbers<[1], [0], [0], [1], [0, 0, 1, 1], [], []>} : vector<16x32xbf16>, vector<32x8xbf16>, vector<16x8xf32> -> vector<16x8xf32>
    %c3_67 = arith.constant 3 : index
    %c0_68 = arith.constant 0 : index
    %c0_69 = arith.constant 0 : index
    %99 = vector.load %arg13[%c3_67, %c0_68, %c0_69] : memref<4x32x8xbf16, #tpu.memory_space<vmem>>, vector<1x32x8xbf16>
    %100 = vector.shape_cast %99 : vector<1x32x8xbf16> to vector<32x8xbf16>
    %cst_70 = arith.constant dense<0.000000e+00> : vector<16x8xf32>
    %101 = tpu.matmul %65, %100, %cst_70 {dimension_numbers = #tpu.dot_dimension_numbers<[1], [0], [0], [1], [0, 0, 1, 1], [], []>} : vector<16x32xbf16>, vector<32x8xbf16>, vector<16x8xf32> -> vector<16x8xf32>
    %102 = vector.shape_cast %68 : vector<8x8xf32> to vector<1x8x8xf32>
    %103 = vector.shape_cast %77 : vector<8x8xf32> to vector<1x8x8xf32>
    %104 = vector.shape_cast %86 : vector<8x8xf32> to vector<1x8x8xf32>
    %105 = vector.shape_cast %95 : vector<8x8xf32> to vector<1x8x8xf32>
    %106 = tpu.concatenate %102, %103, %104, %105 in 0 : vector<1x8x8xf32>, vector<1x8x8xf32>, vector<1x8x8xf32>, vector<1x8x8xf32> -> vector<4x8x8xf32>
    %c0_71 = arith.constant 0 : index
    %c0_72 = arith.constant 0 : index
    %c0_73 = arith.constant 0 : index
    %107 = vector.load %arg10[%c0_71, %c0_72, %c0_73] : memref<4x1x8xf32, #tpu.memory_space<vmem>>, vector<4x1x8xf32>
    %108 = vector.broadcast %107 : vector<4x1x8xf32> to vector<4x8x8xf32>
    %109 = arith.addf %106, %108 : vector<4x8x8xf32>
    %cst_74 = arith.constant 0.353553385 : f32
    %110 = vector.broadcast %cst_74 : f32 to vector<4x8x8xf32>
    %111 = arith.mulf %109, %110 : vector<4x8x8xf32>
    %112 = vector.shape_cast %71 : vector<16x8xf32> to vector<1x16x8xf32>
    %113 = vector.shape_cast %80 : vector<16x8xf32> to vector<1x16x8xf32>
    %114 = vector.shape_cast %89 : vector<16x8xf32> to vector<1x16x8xf32>
    %115 = vector.shape_cast %98 : vector<16x8xf32> to vector<1x16x8xf32>
    %116 = tpu.concatenate %112, %113, %114, %115 in 0 : vector<1x16x8xf32>, vector<1x16x8xf32>, vector<1x16x8xf32>, vector<1x16x8xf32> -> vector<4x16x8xf32>
    %c0_75 = arith.constant 0 : index
    %c0_76 = arith.constant 0 : index
    %c0_77 = arith.constant 0 : index
    %117 = vector.load %arg12[%c0_75, %c0_76, %c0_77] : memref<4x1x8xf32, #tpu.memory_space<vmem>>, vector<4x1x8xf32>
    %118 = vector.broadcast %117 : vector<4x1x8xf32> to vector<4x16x8xf32>
    %119 = arith.addf %116, %118 : vector<4x16x8xf32>
    %120 = vector.shape_cast %74 : vector<16x8xf32> to vector<1x16x8xf32>
    %121 = vector.shape_cast %83 : vector<16x8xf32> to vector<1x16x8xf32>
    %122 = vector.shape_cast %92 : vector<16x8xf32> to vector<1x16x8xf32>
    %123 = vector.shape_cast %101 : vector<16x8xf32> to vector<1x16x8xf32>
    %124 = tpu.concatenate %120, %121, %122, %123 in 0 : vector<1x16x8xf32>, vector<1x16x8xf32>, vector<1x16x8xf32>, vector<1x16x8xf32> -> vector<4x16x8xf32>
    %c0_78 = arith.constant 0 : index
    %c0_79 = arith.constant 0 : index
    %c0_80 = arith.constant 0 : index
    %125 = vector.load %arg14[%c0_78, %c0_79, %c0_80] : memref<4x1x8xf32, #tpu.memory_space<vmem>>, vector<4x1x8xf32>
    %126 = vector.broadcast %125 : vector<4x1x8xf32> to vector<4x16x8xf32>
    %127 = arith.addf %124, %126 : vector<4x16x8xf32>
    %128 = arith.truncf %111 : vector<4x8x8xf32> to vector<4x8x8xbf16>
    %129 = arith.truncf %119 : vector<4x16x8xf32> to vector<4x16x8xbf16>
    "tpu.trace_start"() <{level = 10 : i32, message = "hqd,hkd->hqk"}> : () -> ()
    %cst_81 = arith.constant dense<0.000000e+00> : vector<4x8x16xf32>
    %130 = tpu.matmul %128, %129, %cst_81 {dimension_numbers = #tpu.dot_dimension_numbers<[2], [2], [1], [1], [0, 0, 0, 1, 1, 1], [0], [0]>} : vector<4x8x8xbf16>, vector<4x16x8xbf16>, vector<4x8x16xf32> -> vector<4x8x16xf32>
    "tpu.trace_stop"() : () -> ()
    %131 = vector.shape_cast %9 : vector<1x16xf32> to vector<1x1x16xf32>
    %132 = vector.broadcast %131 : vector<1x1x16xf32> to vector<4x8x16xf32>
    %133 = arith.addf %130, %132 : vector<4x8x16xf32>
    %cst_82 = arith.constant dense<0xFF800000> : vector<4x8xf32>
    %134 = vector.multi_reduction <maximumf>, %133, %cst_82 [2] : vector<4x8x16xf32> to vector<4x8xf32>
    %135 = vector.shape_cast %134 : vector<4x8xf32> to vector<4x8x1xf32>
    %136 = vector.broadcast %135 : vector<4x8x1xf32> to vector<4x8x16xf32>
    %137 = arith.subf %133, %136 : vector<4x8x16xf32>
    %138 = math.exp %137 : vector<4x8x16xf32>
    %cst_83 = arith.constant dense<0.000000e+00> : vector<4x8xf32>
    %139 = vector.multi_reduction <add>, %138, %cst_83 [2] : vector<4x8x16xf32> to vector<4x8xf32>
    %140 = vector.shape_cast %139 : vector<4x8xf32> to vector<4x8x1xf32>
    %141 = tpu.reciprocal %140 {approx = true} : vector<4x8x1xf32> -> vector<4x8x1xf32>
    %142 = vector.broadcast %141 : vector<4x8x1xf32> to vector<4x8x16xf32>
    %143 = arith.mulf %138, %142 : vector<4x8x16xf32>
    %144 = arith.truncf %143 : vector<4x8x16xf32> to vector<4x8x16xbf16>
    %145 = arith.truncf %127 : vector<4x16x8xf32> to vector<4x16x8xbf16>
    "tpu.trace_start"() <{level = 10 : i32, message = "hqk,hkd->hqd"}> : () -> ()
    %cst_84 = arith.constant dense<0.000000e+00> : vector<4x8x8xf32>
    %146 = tpu.matmul %144, %145, %cst_84 {dimension_numbers = #tpu.dot_dimension_numbers<[2], [1], [1], [2], [0, 0, 0, 1, 1, 2], [0], [0]>} : vector<4x8x16xbf16>, vector<4x16x8xbf16>, vector<4x8x8xf32> -> vector<4x8x8xf32>
    "tpu.trace_stop"() : () -> ()
    %147 = arith.truncf %146 : vector<4x8x8xf32> to vector<4x8x8xbf16>
    %c0_85 = arith.constant 0 : index
    %c0_86 = arith.constant 0 : index
    %c0_87 = arith.constant 0 : index
    %148 = vector.load %arg15[%c0_85, %c0_86, %c0_87] : memref<4x8x32xbf16, #tpu.memory_space<vmem>>, vector<4x8x32xbf16>
    "tpu.trace_start"() <{level = 10 : i32, message = "hqd,hde->hqe"}> : () -> ()
    %cst_88 = arith.constant dense<0.000000e+00> : vector<4x8x32xf32>
    %149 = tpu.matmul %147, %148, %cst_88 {dimension_numbers = #tpu.dot_dimension_numbers<[2], [1], [1], [2], [0, 0, 0, 1, 1, 2], [0], [0]>} : vector<4x8x8xbf16>, vector<4x8x32xbf16>, vector<4x8x32xf32> -> vector<4x8x32xf32>
    "tpu.trace_stop"() : () -> ()
    %cst_89 = arith.constant dense<0.000000e+00> : vector<8x32xf32>
    %150 = vector.multi_reduction <add>, %149, %cst_89 [0] : vector<4x8x32xf32> to vector<8x32xf32>
    %c0_90 = arith.constant 0 : index
    %c0_91 = arith.constant 0 : index
    %151 = vector.load %arg16[%c0_90, %c0_91] : memref<1x32xf32, #tpu.memory_space<vmem>>, vector<1x32xf32>
    %152 = vector.broadcast %151 : vector<1x32xf32> to vector<8x32xf32>
    %153 = arith.addf %150, %152 : vector<8x32xf32>
    %c0_92 = arith.constant 0 : index
    %c0_93 = arith.constant 0 : index
    %154 = vector.load %arg17[%c0_92, %c0_93] : memref<1x32xf32, #tpu.memory_space<vmem>>, vector<1x32xf32>
    %c0_94 = arith.constant 0 : index
    %c0_95 = arith.constant 0 : index
    %155 = vector.load %arg18[%c0_94, %c0_95] : memref<1x32xf32, #tpu.memory_space<vmem>>, vector<1x32xf32>
    %cst_96 = arith.constant dense<0.000000e+00> : vector<8xf32>
    %156 = vector.multi_reduction <add>, %153, %cst_96 [1] : vector<8x32xf32> to vector<8xf32>
    %157 = vector.shape_cast %156 : vector<8xf32> to vector<8x1xf32>
    %cst_97 = arith.constant 3.200000e+01 : f32
    %158 = vector.broadcast %cst_97 : f32 to vector<8x1xf32>
    %159 = arith.divf %157, %158 : vector<8x1xf32>
    %160 = vector.broadcast %159 : vector<8x1xf32> to vector<8x32xf32>
    %161 = arith.subf %153, %160 : vector<8x32xf32>
    %162 = arith.mulf %161, %161 : vector<8x32xf32>
    %cst_98 = arith.constant dense<0.000000e+00> : vector<8xf32>
    %163 = vector.multi_reduction <add>, %162, %cst_98 [1] : vector<8x32xf32> to vector<8xf32>
    %164 = vector.shape_cast %163 : vector<8xf32> to vector<8x1xf32>
    %cst_99 = arith.constant 3.200000e+01 : f32
    %165 = vector.broadcast %cst_99 : f32 to vector<8x1xf32>
    %166 = arith.divf %164, %165 : vector<8x1xf32>
    %167 = vector.broadcast %159 : vector<8x1xf32> to vector<8x32xf32>
    %168 = arith.subf %153, %167 : vector<8x32xf32>
    %cst_100 = arith.constant 9.99999997E-7 : f32
    %169 = vector.broadcast %cst_100 : f32 to vector<8x1xf32>
    %170 = arith.addf %166, %169 : vector<8x1xf32>
    %171 = math.rsqrt %170 : vector<8x1xf32>
    %172 = vector.broadcast %171 : vector<8x1xf32> to vector<8x32xf32>
    %173 = arith.mulf %168, %172 : vector<8x32xf32>
    %174 = vector.broadcast %154 : vector<1x32xf32> to vector<8x32xf32>
    %175 = arith.mulf %173, %174 : vector<8x32xf32>
    %176 = vector.broadcast %155 : vector<1x32xf32> to vector<8x32xf32>
    %177 = arith.addf %175, %176 : vector<8x32xf32>
    %178 = arith.truncf %177 : vector<8x32xf32> to vector<8x32xbf16>
    %c0_101 = arith.constant 0 : index
    %c0_102 = arith.constant 0 : index
    %179 = vector.load %arg19[%c0_101, %c0_102] : memref<32x32xbf16, #tpu.memory_space<vmem>>, vector<32x32xbf16>
    %cst_103 = arith.constant dense<0.000000e+00> : vector<8x32xf32>
    %180 = tpu.matmul %178, %179, %cst_103 {dimension_numbers = #tpu.dot_dimension_numbers<[1], [0], [0], [1], [0, 0, 1, 1], [], []>} : vector<8x32xbf16>, vector<32x32xbf16>, vector<8x32xf32> -> vector<8x32xf32>
    %c0_104 = arith.constant 0 : index
    %c0_105 = arith.constant 0 : index
    %c0_106 = arith.constant 0 : index
    %181 = vector.load %arg20[%c0_104, %c0_105, %c0_106] : memref<1x8x32xf32, #tpu.memory_space<vmem>>, vector<1x8x32xf32>
    %182 = vector.shape_cast %181 : vector<1x8x32xf32> to vector<8x32xf32>
    %183 = vector.shape_cast %180 : vector<8x32xf32> to vector<1x8x32xf32>
    tpu.vector_store %arg20[%c0_104, %c0_105, %c0_106], %183 {strides = array<i32>} : memref<1x8x32xf32, #tpu.memory_space<vmem>>, vector<1x8x32xf32>,
    return
  }
  func.func @transform_0(%arg0: i32, %arg1: memref<2xi32, #tpu.memory_space<smem>>) -> (i32, i32, i32) {
    %c0_i32 = arith.constant 0 : i32
    %c0_i32_0 = arith.constant 0 : i32
    %c0_i32_1 = arith.constant 0 : i32
    return %arg0, %c0_i32, %c0_i32_0 : i32, i32, i32
  }
  func.func @transform_1(%arg0: i32, %arg1: memref<2xi32, #tpu.memory_space<smem>>) -> (i32, i32, i32) {
    %c0_i32 = arith.constant 0 : i32
    %c0_i32_0 = arith.constant 0 : i32
    %c0_i32_1 = arith.constant 0 : i32
    return %arg0, %c0_i32, %c0_i32_0 : i32, i32, i32
  }
  func.func @transform_2(%arg0: i32, %arg1: memref<2xi32, #tpu.memory_space<smem>>) -> (i32, i32) {
    %c0_i32 = arith.constant 0 : i32
    %c0_i32_0 = arith.constant 0 : i32
    %c0_i32_1 = arith.constant 0 : i32
    return %c0_i32, %c0_i32_0 : i32, i32
  }
  func.func @transform_3(%arg0: i32, %arg1: memref<2xi32, #tpu.memory_space<smem>>) -> (i32, i32) {
    %c0_i32 = arith.constant 0 : i32
    %c0_i32_0 = arith.constant 0 : i32
    %c0_i32_1 = arith.constant 0 : i32
    return %c0_i32, %c0_i32_0 : i32, i32
  }
  func.func @transform_4(%arg0: i32, %arg1: memref<2xi32, #tpu.memory_space<smem>>) -> (i32, i32) {
    %c0_i32 = arith.constant 0 : i32
    %c0_i32_0 = arith.constant 0 : i32
    %c0_i32_1 = arith.constant 0 : i32
    return %c0_i32, %c0_i32_0 : i32, i32
  }
  func.func @transform_5(%arg0: i32, %arg1: memref<2xi32, #tpu.memory_space<smem>>) -> (i32, i32) {
    %c0_i32 = arith.constant 0 : i32
    %c0_i32_0 = arith.constant 0 : i32
    %c0_i32_1 = arith.constant 0 : i32
    return %c0_i32, %c0_i32_0 : i32, i32
  }
  func.func @transform_6(%arg0: i32, %arg1: memref<2xi32, #tpu.memory_space<smem>>) -> (i32, i32) {
    %c0_i32 = arith.constant 0 : i32
    %c0_i32_0 = arith.constant 0 : i32
    %c0_i32_1 = arith.constant 0 : i32
    return %c0_i32, %c0_i32_0 : i32, i32
  }
  func.func @transform_7(%arg0: i32, %arg1: memref<2xi32, #tpu.memory_space<smem>>) -> (i32, i32, i32) {
    %c0_i32 = arith.constant 0 : i32
    %c0_i32_0 = arith.constant 0 : i32
    %c0_i32_1 = arith.constant 0 : i32
    %c0_i32_2 = arith.constant 0 : i32
    return %c0_i32, %c0_i32_0, %c0_i32_1 : i32, i32, i32
  }
  func.func @transform_8(%arg0: i32, %arg1: memref<2xi32, #tpu.memory_space<smem>>) -> (i32, i32, i32) {
    %c0_i32 = arith.constant 0 : i32
    %c0_i32_0 = arith.constant 0 : i32
    %c0_i32_1 = arith.constant 0 : i32
    %c0_i32_2 = arith.constant 0 : i32
    return %c0_i32, %c0_i32_0, %c0_i32_1 : i32, i32, i32
  }
  func.func @transform_9(%arg0: i32, %arg1: memref<2xi32, #tpu.memory_space<smem>>) -> (i32, i32, i32) {
    %c0_i32 = arith.constant 0 : i32
    %c0_i32_0 = arith.constant 0 : i32
    %c0_i32_1 = arith.constant 0 : i32
    %c0_i32_2 = arith.constant 0 : i32
    return %c0_i32, %c0_i32_0, %c0_i32_1 : i32, i32, i32
  }
  func.func @transform_10(%arg0: i32, %arg1: memref<2xi32, #tpu.memory_space<smem>>) -> (i32, i32, i32) {
    %c0_i32 = arith.constant 0 : i32
    %c0_i32_0 = arith.constant 0 : i32
    %c0_i32_1 = arith.constant 0 : i32
    %c0_i32_2 = arith.constant 0 : i32
    return %c0_i32, %c0_i32_0, %c0_i32_1 : i32, i32, i32
  }
  func.func @transform_11(%arg0: i32, %arg1: memref<2xi32, #tpu.memory_space<smem>>) -> (i32, i32, i32) {
    %c0_i32 = arith.constant 0 : i32
    %c0_i32_0 = arith.constant 0 : i32
    %c0_i32_1 = arith.constant 0 : i32
    %c0_i32_2 = arith.constant 0 : i32
    return %c0_i32, %c0_i32_0, %c0_i32_1 : i32, i32, i32
  }
  func.func @transform_12(%arg0: i32, %arg1: memref<2xi32, #tpu.memory_space<smem>>) -> (i32, i32, i32) {
    %c0_i32 = arith.constant 0 : i32
    %c0_i32_0 = arith.constant 0 : i32
    %c0_i32_1 = arith.constant 0 : i32
    %c0_i32_2 = arith.constant 0 : i32
    return %c0_i32, %c0_i32_0, %c0_i32_1 : i32, i32, i32
  }
  func.func @transform_13(%arg0: i32, %arg1: memref<2xi32, #tpu.memory_space<smem>>) -> (i32, i32, i32) {
    %c0_i32 = arith.constant 0 : i32
    %c0_i32_0 = arith.constant 0 : i32
    %c0_i32_1 = arith.constant 0 : i32
    %c0_i32_2 = arith.constant 0 : i32
    return %c0_i32, %c0_i32_0, %c0_i32_1 : i32, i32, i32
  }
  func.func @transform_14(%arg0: i32, %arg1: memref<2xi32, #tpu.memory_space<smem>>) -> (i32, i32) {
    %c0_i32 = arith.constant 0 : i32
    %c0_i32_0 = arith.constant 0 : i32
    %c0_i32_1 = arith.constant 0 : i32
    return %c0_i32, %c0_i32_0 : i32, i32
  }
  func.func @transform_15(%arg0: i32, %arg1: memref<2xi32, #tpu.memory_space<smem>>) -> (i32, i32) {
    %c0_i32 = arith.constant 0 : i32
    %c0_i32_0 = arith.constant 0 : i32
    %c0_i32_1 = arith.constant 0 : i32
    return %c0_i32, %c0_i32_0 : i32, i32
  }
  func.func @transform_16(%arg0: i32, %arg1: memref<2xi32, #tpu.memory_space<smem>>) -> (i32, i32) {
    %c0_i32 = arith.constant 0 : i32
    %c0_i32_0 = arith.constant 0 : i32
    %c0_i32_1 = arith.constant 0 : i32
    return %c0_i32, %c0_i32_0 : i32, i32
  }
  func.func @transform_17(%arg0: i32, %arg1: memref<2xi32, #tpu.memory_space<smem>>) -> (i32, i32) {
    %c0_i32 = arith.constant 0 : i32
    %c0_i32_0 = arith.constant 0 : i32
    %c0_i32_1 = arith.constant 0 : i32
    return %c0_i32, %c0_i32_0 : i32, i32
  }
  func.func @transform_18(%arg0: i32, %arg1: memref<2xi32, #tpu.memory_space<smem>>) -> (i32, i32, i32) {
    %c0_i32 = arith.constant 0 : i32
    %c0_i32_0 = arith.constant 0 : i32
    %c0_i32_1 = arith.constant 0 : i32
    return %arg0, %c0_i32, %c0_i32_0 : i32, i32, i32
  }
}

</mosaic_0001>

<llo_original>
// kernel: tpu_custom_call.1
$region0: #{tpu_custom_call.1}
  #allocation0 [shape = 'u32[]', space=smem, size = 0x4, offset = 0x4, fixed_abs, tag = 'smem constant byte address 0x4 - core index']
  #allocation1 [shape = 'u32[144,128]{1,0:T(1,128)}', space=vmem, size = 0x12000, scoped, tag = 'internal scratch']
  #allocation2 [shape = 's32[1]{0}', space=sflag, size = 0x4, scoped, tag = 'scoped memory for tpu_custom_call.1']
  #allocation3 [shape = 'u8[512]{0}', space=smem, size = 0x200, scoped, tag = 'prefetched SMEM operand 0']
  %s0 = inlined_call_operand.vmem [shape: s32[2], index: 0, kind: input, shape index: {}]
  %s1 = inlined_call_operand.vmem [shape: f32[2,16,32], index: 1, kind: input, shape index: {}]
  %s2 = inlined_call_operand.vmem [shape: bf16[2,16,32], index: 2, kind: input, shape index: {}]
  %s3 = inlined_call_operand.vmem [shape: f32[8,32], index: 3, kind: input, shape index: {}]
  %s4 = inlined_call_operand.vmem [shape: f32[1,32], index: 4, kind: input, shape index: {}]
  %s5 = inlined_call_operand.vmem [shape: f32[1,32], index: 5, kind: input, shape index: {}]
  %s6 = inlined_call_operand.vmem [shape: f32[1,32], index: 6, kind: input, shape index: {}]
  %s7 = inlined_call_operand.vmem [shape: f32[1,32], index: 7, kind: input, shape index: {}]
  %s8 = inlined_call_operand.vmem [shape: bf16[4,32,8], index: 8, kind: input, shape index: {}]
  %s9 = inlined_call_operand.vmem [shape: f32[4,1,8], index: 9, kind: input, shape index: {}]
  %s10 = inlined_call_operand.vmem [shape: bf16[4,32,8], index: 10, kind: input, shape index: {}]
  %s11 = inlined_call_operand.vmem [shape: f32[4,1,8], index: 11, kind: input, shape index: {}]
  %s12 = inlined_call_operand.vmem [shape: bf16[4,32,8], index: 12, kind: input, shape index: {}]
  %s13 = inlined_call_operand.vmem [shape: f32[4,1,8], index: 13, kind: input, shape index: {}]
  %s14 = inlined_call_operand.vmem [shape: bf16[4,8,32], index: 14, kind: input, shape index: {}]
  %s15 = inlined_call_operand.vmem [shape: f32[1,32], index: 15, kind: input, shape index: {}]
  %s16 = inlined_call_operand.vmem [shape: f32[1,32], index: 16, kind: input, shape index: {}]
  %s17 = inlined_call_operand.vmem [shape: f32[1,32], index: 17, kind: input, shape index: {}]
  %s18 = inlined_call_operand.vmem [shape: bf16[32,32], index: 18, kind: input, shape index: {}]
  %s19 = inlined_call_operand.hbm [shape: f32[2,8,32], index: 19, kind: output, shape index: {}]
  %s20 = sld [smem:[#allocation0]]
  $region105: #{tpu_custom_call.1} parent=0
    _
  %s22 = ssub.s32 1, %s20
  %s23 = scalar_select 0, %s22, %s20
  %s24 = sshll.u32 %s0, 4
  %s25 = int_to_ptr.vmem [resolvable:$true] %s24
  %27 = dma.vmem_to_smem %s25, 16, [#allocation3], [#allocation2]
  %28 = dma.done [#allocation2], 16
  %29 = sfence
  $region1: #{tpu_custom_call.1} parent=0
    #allocation4 [shape = 'u8[8192]{0}', space=vmem, size = 0x2000, scoped, tag = 'output window, operand 0']
    #allocation5 [shape = 's32[2]{0}', space=sflag, size = 0x8, scoped, tag = 'scoped memory for tpu_custom_call.1']
    %30 = vsyncpa [#allocation5], 0
    %s31 = scalar_lea.sflag [#allocation5], 1
    %32 = vsyncpa %s31, 0
    loop: start=0, step=1, limit=4
    $region2: #{tpu_custom_call.1} parent=1 // loop_pre_header
      _
    $region3: #{tpu_custom_call.1} parent=1 // loop_header
      %s34 = sphi 0, %s38
      %p35 = scmp.ge.s32.totalorder %s34, 4
      %s44 = sphi 0, %s46
      %s47 = sphi 0, %s44
      %s48 = sphi 0, %s47
      %s64 = sphi 0, %s48
      %s70 = sphi 0, %s72
      %s73 = sphi 0, %s70
      %s74 = sphi 0, %s73
      %s90 = sphi 0, %s74
      %s94 = sphi 0, %s94
      %s96 = sphi 0, %s94
      %s97 = sphi 0, %s96
      %s111 = sphi 0, %s97
      %s115 = sphi 0, %s115
      %s117 = sphi 0, %s115
      %s118 = sphi 0, %s117
      %s132 = sphi 0, %s118
      %s136 = sphi 0, %s136
      %s138 = sphi 0, %s136
      %s139 = sphi 0, %s138
      %s153 = sphi 0, %s139
      %s157 = sphi 0, %s157
      %s159 = sphi 0, %s157
      %s160 = sphi 0, %s159
      %s174 = sphi 0, %s160
      %s178 = sphi 0, %s178
      %s180 = sphi 0, %s178
      %s181 = sphi 0, %s180
      %s195 = sphi 0, %s181
      %s199 = sphi 0, %s199
      %s201 = sphi 0, %s199
      %s202 = sphi 0, %s201
      %s216 = sphi 0, %s202
      %s220 = sphi 0, %s220
      %s222 = sphi 0, %s220
      %s223 = sphi 0, %s222
      %s237 = sphi 0, %s223
      %s241 = sphi 0, %s241
      %s243 = sphi 0, %s241
      %s244 = sphi 0, %s243
      %s258 = sphi 0, %s244
      %s262 = sphi 0, %s262
      %s264 = sphi 0, %s262
      %s265 = sphi 0, %s264
      %s279 = sphi 0, %s265
      %s283 = sphi 0, %s283
      %s285 = sphi 0, %s283
      %s286 = sphi 0, %s285
      %s300 = sphi 0, %s286
      %s304 = sphi 0, %s304
      %s306 = sphi 0, %s304
      %s307 = sphi 0, %s306
      %s321 = sphi 0, %s307
      %s325 = sphi 0, %s325
      %s327 = sphi 0, %s325
      %s328 = sphi 0, %s327
      %s342 = sphi 0, %s328
      %s346 = sphi 0, %s346
      %s348 = sphi 0, %s346
      %s349 = sphi 0, %s348
      %s363 = sphi 0, %s349
      %s367 = sphi 0, %s367
      %s369 = sphi 0, %s367
      %s370 = sphi 0, %s369
      %s384 = sphi 0, %s370
      %s388 = sphi 0, %s388
      %s390 = sphi 0, %s388
      %s391 = sphi 0, %s390
      %s405 = sphi 0, %s391
      %s409 = sphi 0, %s409
      %s411 = sphi 0, %s409
      %s412 = sphi 0, %s411
      %s426 = sphi 0, %s412
      %s432 = sphi 0, %s434
      %s435 = sphi 0, %s432
      %s436 = sphi 0, %s435
      %s452 = sphi 0, %s436
    $region4: #{tpu_custom_call.1} parent=1 // loop_header_branch
      %37 = sbr.rel (%p35) target = $region8
    $region5: #{tpu_custom_call.1} parent=1 // loop_body
      %s39 = ssub.s32 %s34, 1
      %s40 = ssub.s32 %s34, 2
      %s41 = sadd.s32 %s34, 1
      %s42 = ssub.s32 %s34, %s41
      %p43 = scmp.eq.s32.totalorder %s42, 0
      %s45 = sadd.s32 %s44, 1
      %s46 = scalar_select %p43, %s44, %s45
      %p49 = pneg %p43
      %p50 = scmp.eq.s32.totalorder %s34, 1
      %p51 = por %p49, %p50
      %p52 = scmp.ne.s32.totalorder %s44, %s47
      %p53 = scmp.eq.s32.totalorder %s34, 0
      %p54 = por %p52, %p53
      %p55 = scmp.ne.s32.totalorder %s44, %s47
      %p56 = scmp.eq.s32.totalorder %s39, 1
      %p57 = por %p55, %p56
      %p58 = scmp.ne.s32.totalorder %s47, %s48
      %p59 = scmp.eq.s32.totalorder %s39, 0
      %p60 = por %p58, %p59
      %p61 = scmp.ne.s32.totalorder %s47, %s48
      %p62 = scmp.eq.s32.totalorder %s40, 1
      %p63 = por %p61, %p62
      %p65 = scmp.ne.s32.totalorder %s48, %s64
      %p66 = scmp.eq.s32.totalorder %s40, 0
      %p67 = por %p65, %p66
      %s68 = ssub.s32 %s34, %s41
      %p69 = scmp.eq.s32.totalorder %s68, 0
      %s71 = sadd.s32 %s70, 1
      %s72 = scalar_select %p69, %s70, %s71
      %p75 = pneg %p69
      %p76 = scmp.eq.s32.totalorder %s34, 1
      %p77 = por %p75, %p76
      %p78 = scmp.ne.s32.totalorder %s70, %s73
      %p79 = scmp.eq.s32.totalorder %s34, 0
      %p80 = por %p78, %p79
      %p81 = scmp.ne.s32.totalorder %s70, %s73
      %p82 = scmp.eq.s32.totalorder %s39, 1
      %p83 = por %p81, %p82
      %p84 = scmp.ne.s32.totalorder %s73, %s74
      %p85 = scmp.eq.s32.totalorder %s39, 0
      %p86 = por %p84, %p85
      %p87 = scmp.ne.s32.totalorder %s73, %s74
      %p88 = scmp.eq.s32.totalorder %s40, 1
      %p89 = por %p87, %p88
      %p91 = scmp.ne.s32.totalorder %s74, %s90
      %p92 = scmp.eq.s32.totalorder %s40, 0
      %p93 = por %p91, %p92
      %s95 = sadd.s32 %s94, 1
      %p98 = scmp.eq.s32.totalorder %s34, 1
      %p99 = scmp.ne.s32.totalorder %s94, %s96
      %p100 = scmp.eq.s32.totalorder %s34, 0
      %p101 = por %p99, %p100
      %p102 = scmp.ne.s32.totalorder %s94, %s96
      %p103 = scmp.eq.s32.totalorder %s39, 1
      %p104 = por %p102, %p103
      %p105 = scmp.ne.s32.totalorder %s96, %s97
      %p106 = scmp.eq.s32.totalorder %s39, 0
      %p107 = por %p105, %p106
      %p108 = scmp.ne.s32.totalorder %s96, %s97
      %p109 = scmp.eq.s32.totalorder %s40, 1
      %p110 = por %p108, %p109
      %p112 = scmp.ne.s32.totalorder %s97, %s111
      %p113 = scmp.eq.s32.totalorder %s40, 0
      %p114 = por %p112, %p113
      %s116 = sadd.s32 %s115, 1
      %p119 = scmp.eq.s32.totalorder %s34, 1
      %p120 = scmp.ne.s32.totalorder %s115, %s117
      %p121 = scmp.eq.s32.totalorder %s34, 0
      %p122 = por %p120, %p121
      %p123 = scmp.ne.s32.totalorder %s115, %s117
      %p124 = scmp.eq.s32.totalorder %s39, 1
      %p125 = por %p123, %p124
      %p126 = scmp.ne.s32.totalorder %s117, %s118
      %p127 = scmp.eq.s32.totalorder %s39, 0
      %p128 = por %p126, %p127
      %p129 = scmp.ne.s32.totalorder %s117, %s118
      %p130 = scmp.eq.s32.totalorder %s40, 1
      %p131 = por %p129, %p130
      %p133 = scmp.ne.s32.totalorder %s118, %s132
      %p134 = scmp.eq.s32.totalorder %s40, 0
      %p135 = por %p133, %p134
      %s137 = sadd.s32 %s136, 1
      %p140 = scmp.eq.s32.totalorder %s34, 1
      %p141 = scmp.ne.s32.totalorder %s136, %s138
      %p142 = scmp.eq.s32.totalorder %s34, 0
      %p143 = por %p141, %p142
      %p144 = scmp.ne.s32.totalorder %s136, %s138
      %p145 = scmp.eq.s32.totalorder %s39, 1
      %p146 = por %p144, %p145
      %p147 = scmp.ne.s32.totalorder %s138, %s139
      %p148 = scmp.eq.s32.totalorder %s39, 0
      %p149 = por %p147, %p148
      %p150 = scmp.ne.s32.totalorder %s138, %s139
      %p151 = scmp.eq.s32.totalorder %s40, 1
      %p152 = por %p150, %p151
      %p154 = scmp.ne.s32.totalorder %s139, %s153
      %p155 = scmp.eq.s32.totalorder %s40, 0
      %p156 = por %p154, %p155
      %s158 = sadd.s32 %s157, 1
      %p161 = scmp.eq.s32.totalorder %s34, 1
      %p162 = scmp.ne.s32.totalorder %s157, %s159
      %p163 = scmp.eq.s32.totalorder %s34, 0
      %p164 = por %p162, %p163
      %p165 = scmp.ne.s32.totalorder %s157, %s159
      %p166 = scmp.eq.s32.totalorder %s39, 1
      %p167 = por %p165, %p166
      %p168 = scmp.ne.s32.totalorder %s159, %s160
      %p169 = scmp.eq.s32.totalorder %s39, 0
      %p170 = por %p168, %p169
      %p171 = scmp.ne.s32.totalorder %s159, %s160
      %p172 = scmp.eq.s32.totalorder %s40, 1
      %p173 = por %p171, %p172
      %p175 = scmp.ne.s32.totalorder %s160, %s174
      %p176 = scmp.eq.s32.totalorder %s40, 0
      %p177 = por %p175, %p176
      %s179 = sadd.s32 %s178, 1
      %p182 = scmp.eq.s32.totalorder %s34, 1
      %p183 = scmp.ne.s32.totalorder %s178, %s180
      %p184 = scmp.eq.s32.totalorder %s34, 0
      %p185 = por %p183, %p184
      %p186 = scmp.ne.s32.totalorder %s178, %s180
      %p187 = scmp.eq.s32.totalorder %s39, 1
      %p188 = por %p186, %p187
      %p189 = scmp.ne.s32.totalorder %s180, %s181
      %p190 = scmp.eq.s32.totalorder %s39, 0
      %p191 = por %p189, %p190
      %p192 = scmp.ne.s32.totalorder %s180, %s181
      %p193 = scmp.eq.s32.totalorder %s40, 1
      %p194 = por %p192, %p193
      %p196 = scmp.ne.s32.totalorder %s181, %s195
      %p197 = scmp.eq.s32.totalorder %s40, 0
      %p198 = por %p196, %p197
      %s200 = sadd.s32 %s199, 1
      %p203 = scmp.eq.s32.totalorder %s34, 1
      %p204 = scmp.ne.s32.totalorder %s199, %s201
      %p205 = scmp.eq.s32.totalorder %s34, 0
      %p206 = por %p204, %p205
      %p207 = scmp.ne.s32.totalorder %s199, %s201
      %p208 = scmp.eq.s32.totalorder %s39, 1
      %p209 = por %p207, %p208
      %p210 = scmp.ne.s32.totalorder %s201, %s202
      %p211 = scmp.eq.s32.totalorder %s39, 0
      %p212 = por %p210, %p211
      %p213 = scmp.ne.s32.totalorder %s201, %s202
      %p214 = scmp.eq.s32.totalorder %s40, 1
      %p215 = por %p213, %p214
      %p217 = scmp.ne.s32.totalorder %s202, %s216
      %p218 = scmp.eq.s32.totalorder %s40, 0
      %p219 = por %p217, %p218
      %s221 = sadd.s32 %s220, 1
      %p224 = scmp.eq.s32.totalorder %s34, 1
      %p225 = scmp.ne.s32.totalorder %s220, %s222
      %p226 = scmp.eq.s32.totalorder %s34, 0
      %p227 = por %p225, %p226
      %p228 = scmp.ne.s32.totalorder %s220, %s222
      %p229 = scmp.eq.s32.totalorder %s39, 1
      %p230 = por %p228, %p229
      %p231 = scmp.ne.s32.totalorder %s222, %s223
      %p232 = scmp.eq.s32.totalorder %s39, 0
      %p233 = por %p231, %p232
      %p234 = scmp.ne.s32.totalorder %s222, %s223
      %p235 = scmp.eq.s32.totalorder %s40, 1
      %p236 = por %p234, %p235
      %p238 = scmp.ne.s32.totalorder %s223, %s237
      %p239 = scmp.eq.s32.totalorder %s40, 0
      %p240 = por %p238, %p239
      %s242 = sadd.s32 %s241, 1
      %p245 = scmp.eq.s32.totalorder %s34, 1
      %p246 = scmp.ne.s32.totalorder %s241, %s243
      %p247 = scmp.eq.s32.totalorder %s34, 0
      %p248 = por %p246, %p247
      %p249 = scmp.ne.s32.totalorder %s241, %s243
      %p250 = scmp.eq.s32.totalorder %s39, 1
      %p251 = por %p249, %p250
      %p252 = scmp.ne.s32.totalorder %s243, %s244
      %p253 = scmp.eq.s32.totalorder %s39, 0
      %p254 = por %p252, %p253
      %p255 = scmp.ne.s32.totalorder %s243, %s244
      %p256 = scmp.eq.s32.totalorder %s40, 1
      %p257 = por %p255, %p256
      %p259 = scmp.ne.s32.totalorder %s244, %s258
      %p260 = scmp.eq.s32.totalorder %s40, 0
      %p261 = por %p259, %p260
      %s263 = sadd.s32 %s262, 1
      %p266 = scmp.eq.s32.totalorder %s34, 1
      %p267 = scmp.ne.s32.totalorder %s262, %s264
      %p268 = scmp.eq.s32.totalorder %s34, 0
      %p269 = por %p267, %p268
      %p270 = scmp.ne.s32.totalorder %s262, %s264
      %p271 = scmp.eq.s32.totalorder %s39, 1
      %p272 = por %p270, %p271
      %p273 = scmp.ne.s32.totalorder %s264, %s265
      %p274 = scmp.eq.s32.totalorder %s39, 0
      %p275 = por %p273, %p274
      %p276 = scmp.ne.s32.totalorder %s264, %s265
      %p277 = scmp.eq.s32.totalorder %s40, 1
      %p278 = por %p276, %p277
      %p280 = scmp.ne.s32.totalorder %s265, %s279
      %p281 = scmp.eq.s32.totalorder %s40, 0
      %p282 = por %p280, %p281
      %s284 = sadd.s32 %s283, 1
      %p287 = scmp.eq.s32.totalorder %s34, 1
      %p288 = scmp.ne.s32.totalorder %s283, %s285
      %p289 = scmp.eq.s32.totalorder %s34, 0
      %p290 = por %p288, %p289
      %p291 = scmp.ne.s32.totalorder %s283, %s285
      %p292 = scmp.eq.s32.totalorder %s39, 1
      %p293 = por %p291, %p292
      %p294 = scmp.ne.s32.totalorder %s285, %s286
      %p295 = scmp.eq.s32.totalorder %s39, 0
      %p296 = por %p294, %p295
      %p297 = scmp.ne.s32.totalorder %s285, %s286
      %p298 = scmp.eq.s32.totalorder %s40, 1
      %p299 = por %p297, %p298
      %p301 = scmp.ne.s32.totalorder %s286, %s300
      %p302 = scmp.eq.s32.totalorder %s40, 0
      %p303 = por %p301, %p302
      %s305 = sadd.s32 %s304, 1
      %p308 = scmp.eq.s32.totalorder %s34, 1
      %p309 = scmp.ne.s32.totalorder %s304, %s306
      %p310 = scmp.eq.s32.totalorder %s34, 0
      %p311 = por %p309, %p310
      %p312 = scmp.ne.s32.totalorder %s304, %s306
      %p313 = scmp.eq.s32.totalorder %s39, 1
      %p314 = por %p312, %p313
      %p315 = scmp.ne.s32.totalorder %s306, %s307
      %p316 = scmp.eq.s32.totalorder %s39, 0
      %p317 = por %p315, %p316
      %p318 = scmp.ne.s32.totalorder %s306, %s307
      %p319 = scmp.eq.s32.totalorder %s40, 1
      %p320 = por %p318, %p319
      %p322 = scmp.ne.s32.totalorder %s307, %s321
      %p323 = scmp.eq.s32.totalorder %s40, 0
      %p324 = por %p322, %p323
      %s326 = sadd.s32 %s325, 1
      %p329 = scmp.eq.s32.totalorder %s34, 1
      %p330 = scmp.ne.s32.totalorder %s325, %s327
      %p331 = scmp.eq.s32.totalorder %s34, 0
      %p332 = por %p330, %p331
      %p333 = scmp.ne.s32.totalorder %s325, %s327
      %p334 = scmp.eq.s32.totalorder %s39, 1
      %p335 = por %p333, %p334
      %p336 = scmp.ne.s32.totalorder %s327, %s328
      %p337 = scmp.eq.s32.totalorder %s39, 0
      %p338 = por %p336, %p337
      %p339 = scmp.ne.s32.totalorder %s327, %s328
      %p340 = scmp.eq.s32.totalorder %s40, 1
      %p341 = por %p339, %p340
      %p343 = scmp.ne.s32.totalorder %s328, %s342
      %p344 = scmp.eq.s32.totalorder %s40, 0
      %p345 = por %p343, %p344
      %s347 = sadd.s32 %s346, 1
      %p350 = scmp.eq.s32.totalorder %s34, 1
      %p351 = scmp.ne.s32.totalorder %s346, %s348
      %p352 = scmp.eq.s32.totalorder %s34, 0
      %p353 = por %p351, %p352
      %p354 = scmp.ne.s32.totalorder %s346, %s348
      %p355 = scmp.eq.s32.totalorder %s39, 1
      %p356 = por %p354, %p355
      %p357 = scmp.ne.s32.totalorder %s348, %s349
      %p358 = scmp.eq.s32.totalorder %s39, 0
      %p359 = por %p357, %p358
      %p360 = scmp.ne.s32.totalorder %s348, %s349
      %p361 = scmp.eq.s32.totalorder %s40, 1
      %p362 = por %p360, %p361
      %p364 = scmp.ne.s32.totalorder %s349, %s363
      %p365 = scmp.eq.s32.totalorder %s40, 0
      %p366 = por %p364, %p365
      %s368 = sadd.s32 %s367, 1
      %p371 = scmp.eq.s32.totalorder %s34, 1
      %p372 = scmp.ne.s32.totalorder %s367, %s369
      %p373 = scmp.eq.s32.totalorder %s34, 0
      %p374 = por %p372, %p373
      %p375 = scmp.ne.s32.totalorder %s367, %s369
      %p376 = scmp.eq.s32.totalorder %s39, 1
      %p377 = por %p375, %p376
      %p378 = scmp.ne.s32.totalorder %s369, %s370
      %p379 = scmp.eq.s32.totalorder %s39, 0
      %p380 = por %p378, %p379
      %p381 = scmp.ne.s32.totalorder %s369, %s370
      %p382 = scmp.eq.s32.totalorder %s40, 1
      %p383 = por %p381, %p382
      %p385 = scmp.ne.s32.totalorder %s370, %s384
      %p386 = scmp.eq.s32.totalorder %s40, 0
      %p387 = por %p385, %p386
      %s389 = sadd.s32 %s388, 1
      %p392 = scmp.eq.s32.totalorder %s34, 1
      %p393 = scmp.ne.s32.totalorder %s388, %s390
      %p394 = scmp.eq.s32.totalorder %s34, 0
      %p395 = por %p393, %p394
      %p396 = scmp.ne.s32.totalorder %s388, %s390
      %p397 = scmp.eq.s32.totalorder %s39, 1
      %p398 = por %p396, %p397
      %p399 = scmp.ne.s32.totalorder %s390, %s391
      %p400 = scmp.eq.s32.totalorder %s39, 0
      %p401 = por %p399, %p400
      %p402 = scmp.ne.s32.totalorder %s390, %s391
      %p403 = scmp.eq.s32.totalorder %s40, 1
      %p404 = por %p402, %p403
      %p406 = scmp.ne.s32.totalorder %s391, %s405
      %p407 = scmp.eq.s32.totalorder %s40, 0
      %p408 = por %p406, %p407
      %s410 = sadd.s32 %s409, 1
      %p413 = scmp.eq.s32.totalorder %s34, 1
      %p414 = scmp.ne.s32.totalorder %s409, %s411
      %p415 = scmp.eq.s32.totalorder %s34, 0
      %p416 = por %p414, %p415
      %p417 = scmp.ne.s32.totalorder %s409, %s411
      %p418 = scmp.eq.s32.totalorder %s39, 1
      %p419 = por %p417, %p418
      %p420 = scmp.ne.s32.totalorder %s411, %s412
      %p421 = scmp.eq.s32.totalorder %s39, 0
      %p422 = por %p420, %p421
      %p423 = scmp.ne.s32.totalorder %s411, %s412
      %p424 = scmp.eq.s32.totalorder %s40, 1
      %p425 = por %p423, %p424
      %p427 = scmp.ne.s32.totalorder %s412, %s426
      %p428 = scmp.eq.s32.totalorder %s40, 0
      %p429 = por %p427, %p428
      %s430 = ssub.s32 %s34, %s41
      %p431 = scmp.eq.s32.totalorder %s430, 0
      %s433 = sadd.s32 %s432, 1
      %s434 = scalar_select %p431, %s432, %s433
      %p437 = pneg %p431
      %p438 = scmp.eq.s32.totalorder %s34, 1
      %p439 = por %p437, %p438
      %p440 = scmp.ne.s32.totalorder %s432, %s435
      %p441 = scmp.eq.s32.totalorder %s34, 0
      %p442 = por %p440, %p441
      %p443 = scmp.ne.s32.totalorder %s432, %s435
      %p444 = scmp.eq.s32.totalorder %s39, 1
      %p445 = por %p443, %p444
      %p446 = scmp.ne.s32.totalorder %s435, %s436
      %p447 = scmp.eq.s32.totalorder %s39, 0
      %p448 = por %p446, %p447
      %p449 = scmp.ne.s32.totalorder %s435, %s436
      %p450 = scmp.eq.s32.totalorder %s40, 1
      %p451 = por %p449, %p450
      %p453 = scmp.ne.s32.totalorder %s436, %s452
      %p454 = scmp.eq.s32.totalorder %s40, 0
      %p455 = por %p453, %p454
      %p456 = scmp.le.s32.totalorder 1, %s34
      %p457 = scmp.lt.s32.totalorder %s34, 3
      %p458 = pnand %p456, %p457
      %p459 = pneg %p458
      // Predicated region
      $region9: #{tpu_custom_call.1} parent=5 // pred_check
        _
      $region10: #{tpu_custom_call.1} parent=5 // pred_check_branch
        %461 = sbr.rel (%p458) target = $region12
      $region11: #{tpu_custom_call.1} parent=5 // pred_region
        %s462 = ssub.s32 %s34, 1
        // Predicated region
        $region13: #{tpu_custom_call.1} parent=11 // pred_check
          %p463 = pneg %p107
        $region14: #{tpu_custom_call.1} parent=11 // pred_check_branch
          %465 = sbr.rel (%p463) target = $region16
        $region15: #{tpu_custom_call.1} parent=11 // pred_region
          _
        $region16: #{tpu_custom_call.1} parent=11 // pred_fallthru
          _
        // Predicated region
        $region17: #{tpu_custom_call.1} parent=11 // pred_check
          %p466 = pneg %p128
        $region18: #{tpu_custom_call.1} parent=11 // pred_check_branch
          %468 = sbr.rel (%p466) target = $region20
        $region19: #{tpu_custom_call.1} parent=11 // pred_region
          _
        $region20: #{tpu_custom_call.1} parent=11 // pred_fallthru
          _
        // Predicated region
        $region21: #{tpu_custom_call.1} parent=11 // pred_check
          %p469 = pneg %p149
        $region22: #{tpu_custom_call.1} parent=11 // pred_check_branch
          %471 = sbr.rel (%p469) target = $region24
        $region23: #{tpu_custom_call.1} parent=11 // pred_region
          _
        $region24: #{tpu_custom_call.1} parent=11 // pred_fallthru
          _
        // Predicated region
        $region25: #{tpu_custom_call.1} parent=11 // pred_check
          %p472 = pneg %p170
        $region26: #{tpu_custom_call.1} parent=11 // pred_check_branch
          %474 = sbr.rel (%p472) target = $region28
        $region27: #{tpu_custom_call.1} parent=11 // pred_region
          _
        $region28: #{tpu_custom_call.1} parent=11 // pred_fallthru
          _
        // Predicated region
        $region29: #{tpu_custom_call.1} parent=11 // pred_check
          %p475 = pneg %p191
        $region30: #{tpu_custom_call.1} parent=11 // pred_check_branch
          %477 = sbr.rel (%p475) target = $region32
        $region31: #{tpu_custom_call.1} parent=11 // pred_region
          _
        $region32: #{tpu_custom_call.1} parent=11 // pred_fallthru
          _
        // Predicated region
        $region33: #{tpu_custom_call.1} parent=11 // pred_check
          %p478 = pneg %p212
        $region34: #{tpu_custom_call.1} parent=11 // pred_check_branch
          %480 = sbr.rel (%p478) target = $region36
        $region35: #{tpu_custom_call.1} parent=11 // pred_region
          _
        $region36: #{tpu_custom_call.1} parent=11 // pred_fallthru
          _
        // Predicated region
        $region37: #{tpu_custom_call.1} parent=11 // pred_check
          %p481 = pneg %p233
        $region38: #{tpu_custom_call.1} parent=11 // pred_check_branch
          %483 = sbr.rel (%p481) target = $region40
        $region39: #{tpu_custom_call.1} parent=11 // pred_region
          _
        $region40: #{tpu_custom_call.1} parent=11 // pred_fallthru
          _
        // Predicated region
        $region41: #{tpu_custom_call.1} parent=11 // pred_check
          %p484 = pneg %p254
        $region42: #{tpu_custom_call.1} parent=11 // pred_check_branch
          %486 = sbr.rel (%p484) target = $region44
        $region43: #{tpu_custom_call.1} parent=11 // pred_region
          _
        $region44: #{tpu_custom_call.1} parent=11 // pred_fallthru
          _
        // Predicated region
        $region45: #{tpu_custom_call.1} parent=11 // pred_check
          %p487 = pneg %p275
        $region46: #{tpu_custom_call.1} parent=11 // pred_check_branch
          %489 = sbr.rel (%p487) target = $region48
        $region47: #{tpu_custom_call.1} parent=11 // pred_region
          _
        $region48: #{tpu_custom_call.1} parent=11 // pred_fallthru
          _
        // Predicated region
        $region49: #{tpu_custom_call.1} parent=11 // pred_check
          %p490 = pneg %p296
        $region50: #{tpu_custom_call.1} parent=11 // pred_check_branch
          %492 = sbr.rel (%p490) target = $region52
        $region51: #{tpu_custom_call.1} parent=11 // pred_region
          _
        $region52: #{tpu_custom_call.1} parent=11 // pred_fallthru
          _
        // Predicated region
        $region53: #{tpu_custom_call.1} parent=11 // pred_check
          %p493 = pneg %p317
        $region54: #{tpu_custom_call.1} parent=11 // pred_check_branch
          %495 = sbr.rel (%p493) target = $region56
        $region55: #{tpu_custom_call.1} parent=11 // pred_region
          _
        $region56: #{tpu_custom_call.1} parent=11 // pred_fallthru
          _
        // Predicated region
        $region57: #{tpu_custom_call.1} parent=11 // pred_check
          %p496 = pneg %p338
        $region58: #{tpu_custom_call.1} parent=11 // pred_check_branch
          %498 = sbr.rel (%p496) target = $region60
        $region59: #{tpu_custom_call.1} parent=11 // pred_region
          _
        $region60: #{tpu_custom_call.1} parent=11 // pred_fallthru
          _
        // Predicated region
        $region61: #{tpu_custom_call.1} parent=11 // pred_check
          %p499 = pneg %p359
        $region62: #{tpu_custom_call.1} parent=11 // pred_check_branch
          %501 = sbr.rel (%p499) target = $region64
        $region63: #{tpu_custom_call.1} parent=11 // pred_region
          _
        $region64: #{tpu_custom_call.1} parent=11 // pred_fallthru
          _
        // Predicated region
        $region65: #{tpu_custom_call.1} parent=11 // pred_check
          %p502 = pneg %p380
        $region66: #{tpu_custom_call.1} parent=11 // pred_check_branch
          %504 = sbr.rel (%p502) target = $region68
        $region67: #{tpu_custom_call.1} parent=11 // pred_region
          _
        $region68: #{tpu_custom_call.1} parent=11 // pred_fallthru
          _
        // Predicated region
        $region69: #{tpu_custom_call.1} parent=11 // pred_check
          %p505 = pneg %p401
        $region70: #{tpu_custom_call.1} parent=11 // pred_check_branch
          %507 = sbr.rel (%p505) target = $region72
        $region71: #{tpu_custom_call.1} parent=11 // pred_region
          _
        $region72: #{tpu_custom_call.1} parent=11 // pred_fallthru
          _
        // Predicated region
        $region73: #{tpu_custom_call.1} parent=11 // pred_check
          %p508 = pneg %p422
        $region74: #{tpu_custom_call.1} parent=11 // pred_check_branch
          %510 = sbr.rel (%p508) target = $region76
        $region75: #{tpu_custom_call.1} parent=11 // pred_region
          _
        $region76: #{tpu_custom_call.1} parent=11 // pred_fallthru
          _
      $region12: #{tpu_custom_call.1} parent=5 // pred_fallthru
        _
      %p511 = scmp.lt.s32.totalorder %s34, 2
      // Predicated region
      $region77: #{tpu_custom_call.1} parent=5 // pred_check
        %p512 = pneg %p511
      $region78: #{tpu_custom_call.1} parent=5 // pred_check_branch
        %514 = sbr.rel (%p512) target = $region80
      $region79: #{tpu_custom_call.1} parent=5 // pred_region
        // Predicated region
        $region81: #{tpu_custom_call.1} parent=79 // pred_check
          %p515 = pneg %p54
        $region82: #{tpu_custom_call.1} parent=79 // pred_check_branch
          %517 = sbr.rel (%p515) target = $region84
        $region83: #{tpu_custom_call.1} parent=79 // pred_region
          %p518 = scmp.lt.s32.totalorder %s34, 1
          %s519 = scalar_select %p518, %s34, 1
          %s520 = smul.addr %s519, 2
          %s521 = smul.addr %s520, 8
          %s522 = scalar_lea.vmem %s1, %s521
        $region84: #{tpu_custom_call.1} parent=79 // pred_fallthru
          _
        // Predicated region
        $region85: #{tpu_custom_call.1} parent=79 // pred_check
          %p523 = pneg %p80
        $region86: #{tpu_custom_call.1} parent=79 // pred_check_branch
          %525 = sbr.rel (%p523) target = $region88
        $region87: #{tpu_custom_call.1} parent=79 // pred_region
          %p526 = scmp.lt.s32.totalorder %s34, 1
          %s527 = scalar_select %p526, %s34, 1
          %s528 = smul.addr %s527, 2
          %s529 = smul.addr %s528, 4
          %s530 = scalar_lea.vmem %s2, %s529
        $region88: #{tpu_custom_call.1} parent=79 // pred_fallthru
          _
      $region80: #{tpu_custom_call.1} parent=5 // pred_fallthru
        _
      %p531 = scmp.le.s32.totalorder 1, %s34
      %p532 = scmp.lt.s32.totalorder %s34, 3
      %p533 = pnand %p531, %p532
      %p534 = pneg %p533
      // Predicated region
      $region89: #{tpu_custom_call.1} parent=5 // pred_check
        _
      $region90: #{tpu_custom_call.1} parent=5 // pred_check_branch
        %536 = sbr.rel (%p533) target = $region92
      $region91: #{tpu_custom_call.1} parent=5 // pred_region
        %s537 = ssub.s32 %s34, 1
        %p538 = scmp.lt.s32.totalorder %s39, 1
        %s539 = scalar_select %p538, %s39, 1
        %s540 = smul.addr %s539, 2
        %s541 = smul.addr %s540, 8
        %s542 = scalar_lea.vmem %s1, %s541
        %p543 = pneg %p60
        %p544 = pneg %p57
        %p545 = scmp.lt.s32.totalorder %s39, 1
        %s546 = scalar_select %p545, %s39, 1
        %s547 = smul.addr %s546, 2
        %s548 = smul.addr %s547, 4
        %s549 = scalar_lea.vmem %s2, %s548
        %p550 = pneg %p86
        %p551 = pneg %p83
        %p552 = pneg %p107
        %p553 = pneg %p104
        %p554 = pneg %p128
        %p555 = pneg %p125
        %p556 = pneg %p149
        %p557 = pneg %p146
        %p558 = pneg %p170
        %p559 = pneg %p167
        %p560 = pneg %p191
        %p561 = pneg %p188
        %p562 = pneg %p212
        %p563 = pneg %p209
        %p564 = pneg %p233
        %p565 = pneg %p230
        %p566 = pneg %p254
        %p567 = pneg %p251
        %p568 = pneg %p275
        %p569 = pneg %p272
        %p570 = pneg %p296
        %p571 = pneg %p293
        %p572 = pneg %p317
        %p573 = pneg %p314
        %p574 = pneg %p338
        %p575 = pneg %p335
        %p576 = pneg %p359
        %p577 = pneg %p356
        %p578 = pneg %p380
        %p579 = pneg %p377
        %p580 = pneg %p401
        %p581 = pneg %p398
        %p582 = pneg %p422
        %p583 = pneg %p419
        %p584 = pneg %p448
        %p585 = pneg %p445
        %s586 = sand.u32 %s435, 1
        %s587 = scalar_lea.sflag [#allocation5], %s586
        %s588 = sand.u32 %s435, 1
        %s589 = smul.addr %s588, 8
        %s590 = scalar_lea.vmem [#allocation4], %s589
        %p591 = scmp.lt.s32.totalorder %s39, 1
        %s592 = scalar_select %p591, %s39, 1
        %s593 = smul.addr %s592, 2
        %s594 = smul.addr %s593, 8
        %s595 = scalar_lea.vmem %s1, %s594
        %p596 = scmp.lt.s32.totalorder %s39, 1
        %s597 = scalar_select %p596, %s39, 1
        %s598 = smul.addr %s597, 2
        %s599 = smul.addr %s598, 4
        %s600 = scalar_lea.vmem %s2, %s599
        %v602 = vld [vmem:[%s595] sm:$0xff]
        %v603 = vld [vmem:[%s595 + $0x8] sm:$0xff]
        %s604 = sld [smem:[#allocation3 + %s39]]
        %v605 = vlaneseq
        %v606 = vand.u32 %v605, 127
        %v607 = vstv %s604
        %vm608 = vcmp.lt.s32.totalorder %v606, %v607
        %v609 = vsel %vm608, 0.0, -1e+09
        %v610 = vld [vmem:[%s6] sm:$0x1]
        %v611 = vld [vmem:[%s7] sm:$0x1]
        %vm612 = vcmask 261120
        %v613 = vsel %vm612, %v602, 0.0
        %614 = vadd.xlane.f32.xlu0 %v613
        %v615 = vpop.xlane.xlu0 %614
        %v616 = vsel %vm612, %v603, 0.0
        %617 = vadd.xlane.f32.xlu0 %v616
        %v618 = vpop.xlane.xlu0 %617
        %v619 = vrcp.pop 32.0
        %v620 = vmul.f32 %v615, %v619
        %v621 = vmul.f32 %v618, %v619
        %v622 = vsub.f32 %v602, %v620
        %v623 = vsub.f32 %v603, %v621
        %v624 = vmul.f32 %v622, %v622
        %v625 = vmul.f32 %v623, %v623
        %v626 = vsel %vm612, %v624, 0.0
        %627 = vadd.xlane.f32.xlu0 %v626
        %v628 = vpop.xlane.xlu0 %627
        %v629 = vsel %vm612, %v625, 0.0
        %630 = vadd.xlane.f32.xlu0 %v629
        %v631 = vpop.xlane.xlu0 %630
        %v632 = vmul.f32 %v628, %v619
        %v633 = vmul.f32 %v631, %v619
        %v634 = vadd.f32 %v632, 1e-06
        %v635 = vadd.f32 %v633, 1e-06
        %v636 = vrsqrt.pop %v634
        %v637 = vrsqrt.pop %v635
        %v638 = vmul.f32 %v622, %v636
        %v639 = vmul.f32 %v623, %v637
        %v641 = vlaneseq
        %v642 = vshrl.u32 %v641, 7
        %v643 = vsub.s32 0, %v642
        %v644 = vrot.slane %v610, %v643
        %v646 = vmul.f32 %v638, %v644
        %v647 = vmul.f32 %v639, %v644
        %v649 = vlaneseq
        %v650 = vshrl.u32 %v649, 7
        %v651 = vsub.s32 0, %v650
        %v652 = vrot.slane %v611, %v651
        %v654 = vadd.f32 %v646, %v652
        %v655 = vadd.f32 %v647, %v652
        %v656 = vld [vmem:[%s3] sm:$0xff]
        %v657 = vld [vmem:[%s4] sm:$0x1]
        %v658 = vld [vmem:[%s5] sm:$0x1]
        %v659 = vsel %vm612, %v656, 0.0
        %660 = vadd.xlane.f32.xlu0 %v659
        %v661 = vpop.xlane.xlu0 %660
        %v662 = vmul.f32 %v661, %v619
        %v663 = vsub.f32 %v656, %v662
        %v664 = vmul.f32 %v663, %v663
        %v665 = vsel %vm612, %v664, 0.0
        %666 = vadd.xlane.f32.xlu0 %v665
        %v667 = vpop.xlane.xlu0 %666
        %v668 = vmul.f32 %v667, %v619
        %v669 = vadd.f32 %v668, 1e-06
        %v670 = vrsqrt.pop %v669
        %v671 = vmul.f32 %v663, %v670
        %v673 = vlaneseq
        %v674 = vshrl.u32 %v673, 7
        %v675 = vsub.s32 0, %v674
        %v676 = vrot.slane %v657, %v675
        %v678 = vmul.f32 %v671, %v676
        %v680 = vlaneseq
        %v681 = vshrl.u32 %v680, 7
        %v682 = vsub.s32 0, %v681
        %v683 = vrot.slane %v658, %v682
        %v685 = vadd.f32 %v678, %v683
        %v686 = vld [vmem:[%s600] sm:$0xf]
        %v687 = vld [vmem:[%s600 + $0x4] sm:$0xf]
        %v688 = vunpack.c.l.bf16 %v686
        %v689 = vunpack.c.l.bf16 %v687
        %v690 = vadd.f32 %v654, %v688
        %v691 = vadd.f32 %v655, %v689
        %v692 = vpack.c.bf16 %v685, %v685
        %v693 = vpack.c.bf16 %v691, %v690
        %v694 = vpack.c.bf16 %v655, %v654
        %v695 = vld [vmem:[%s8] sm:$0xf]
        %v696 = vld [vmem:[%s8 + $0x4] sm:$0xf]
        %v697 = vld [vmem:[%s8 + $0x8] sm:$0xf]
        %v698 = vld [vmem:[%s8 + $0xc] sm:$0xf]
        %v703 = vunpack.c.l.b16 %v695
        %v704 = vunpack.c.l.b16 %v696
        %v705 = vunpack.c.l.b16 %v697
        %v706 = vunpack.c.l.b16 %v698
        %v707 = vpack.c.b16 %v704, %v703
        %v708 = vpack.c.b16 %v706, %v705
        %v712 = vsel %vm612, %v692, 0
        %714 = vmatprep.subr.bf16.mxu0 0
        %715 = vmatpush1.bf16.msra.mxu0 %v707
        %716 = vmatprep.subr.bf16.mxu0 0
        %717 = vmatpush1.bf16.msra.mxu0 %v708
        %718 = vmatprep.subr.bf16.mxu0 0
        %719 = vmatpush1.bf16.msra.mxu0 0
        %720 = vmatprep.subr.bf16.mxu0 0
        %721 = vmatpush1.bf16.msra.mxu0 0
        %722 = vmatprep.subr.bf16.mxu0 0
        %723 = vmatpush1.bf16.msra.mxu0 0
        %724 = vmatprep.subr.bf16.mxu0 0
        %725 = vmatpush1.bf16.msra.mxu0 0
        %726 = vmatprep.subr.bf16.mxu0 0
        %727 = vmatpush1.bf16.msra.mxu0 0
        %728 = vmatprep.subr.bf16.mxu0 0
        %729 = vmatpush1.bf16.msra.mxu0 0
        %730 = vmatprep.subr.bf16.mxu0 0
        %731 = vmatpush1.bf16.msra.mxu0 0
        %732 = vmatprep.subr.bf16.mxu0 0
        %733 = vmatpush1.bf16.msra.mxu0 0
        %734 = vmatprep.subr.bf16.mxu0 0
        %735 = vmatpush1.bf16.msra.mxu0 0
        %736 = vmatprep.subr.bf16.mxu0 0
        %737 = vmatpush1.bf16.msra.mxu0 0
        %738 = vmatprep.subr.bf16.mxu0 0
        %739 = vmatpush1.bf16.msra.mxu0 0
        %740 = vmatprep.subr.bf16.mxu0 0
        %741 = vmatpush1.bf16.msra.mxu0 0
        %742 = vmatprep.subr.bf16.mxu0 0
        %743 = vmatpush1.bf16.msra.mxu0 0
        %744 = vmatprep.subr.bf16.mxu0 0
        %745 = vmatpush1.bf16.msra.mxu0 0
        %746 = vmatprep.mubr.bf16.mxu0 0
        %747 = vmatmul.mubr.bf16.gmra.mrb[0].mxu0 %v712
        %v748 = vpop.f32.mrb[0].mxu0
        %v749 = vadd.f32 0.0, %v748
        %v750 = vpop.f32.mrb[0].mxu0
        %v751 = vpop.f32.mrb[0].mxu0
        %v752 = vpop.f32.mrb[0].mxu0
        %753 = vdwg.mxu0
        %v754 = vld [vmem:[%s10] sm:$0xf]
        %v755 = vld [vmem:[%s10 + $0x4] sm:$0xf]
        %v756 = vld [vmem:[%s10 + $0x8] sm:$0xf]
        %v757 = vld [vmem:[%s10 + $0xc] sm:$0xf]
        %v762 = vunpack.c.l.b16 %v754
        %v763 = vunpack.c.l.b16 %v755
        %v764 = vunpack.c.l.b16 %v756
        %v765 = vunpack.c.l.b16 %v757
        %v766 = vpack.c.b16 %v763, %v762
        %v767 = vpack.c.b16 %v765, %v764
        %v771 = vsel %vm612, %v693, 0
        %773 = vmatprep.subr.bf16.mxu0 0
        %774 = vmatpush1.bf16.msra.mxu0 %v766
        %775 = vmatprep.subr.bf16.mxu0 0
        %776 = vmatpush1.bf16.msra.mxu0 %v767
        %777 = vmatprep.subr.bf16.mxu0 0
        %778 = vmatpush1.bf16.msra.mxu0 0
        %779 = vmatprep.subr.bf16.mxu0 0
        %780 = vmatpush1.bf16.msra.mxu0 0
        %781 = vmatprep.subr.bf16.mxu0 0
        %782 = vmatpush1.bf16.msra.mxu0 0
        %783 = vmatprep.subr.bf16.mxu0 0
        %784 = vmatpush1.bf16.msra.mxu0 0
        %785 = vmatprep.subr.bf16.mxu0 0
        %786 = vmatpush1.bf16.msra.mxu0 0
        %787 = vmatprep.subr.bf16.mxu0 0
        %788 = vmatpush1.bf16.msra.mxu0 0
        %789 = vmatprep.subr.bf16.mxu0 0
        %790 = vmatpush1.bf16.msra.mxu0 0
        %791 = vmatprep.subr.bf16.mxu0 0
        %792 = vmatpush1.bf16.msra.mxu0 0
        %793 = vmatprep.subr.bf16.mxu0 0
        %794 = vmatpush1.bf16.msra.mxu0 0
        %795 = vmatprep.subr.bf16.mxu0 0
        %796 = vmatpush1.bf16.msra.mxu0 0
        %797 = vmatprep.subr.bf16.mxu0 0
        %798 = vmatpush1.bf16.msra.mxu0 0
        %799 = vmatprep.subr.bf16.mxu0 0
        %800 = vmatpush1.bf16.msra.mxu0 0
        %801 = vmatprep.subr.bf16.mxu0 0
        %802 = vmatpush1.bf16.msra.mxu0 0
        %803 = vmatprep.subr.bf16.mxu0 0
        %804 = vmatpush1.bf16.msra.mxu0 0
        %805 = vmatprep.mubr.bf16.mxu0 0
        %806 = vmatmul.mubr.bf16.gmra.mrb[0].mxu0 %v771
        %v807 = vpop.f32.mrb[0].mxu0
        %v808 = vadd.f32 0.0, %v807
        %v809 = vpop.f32.mrb[0].mxu0
        %v810 = vpop.f32.mrb[0].mxu0
        %v811 = vadd.f32 0.0, %v810
        %v812 = vpop.f32.mrb[0].mxu0
        %813 = vdwg.mxu0
        %v814 = vld [vmem:[%s12] sm:$0xf]
        %v815 = vld [vmem:[%s12 + $0x4] sm:$0xf]
        %v816 = vld [vmem:[%s12 + $0x8] sm:$0xf]
        %v817 = vld [vmem:[%s12 + $0xc] sm:$0xf]
        %v822 = vunpack.c.l.b16 %v814
        %v823 = vunpack.c.l.b16 %v815
        %v824 = vunpack.c.l.b16 %v816
        %v825 = vunpack.c.l.b16 %v817
        %v826 = vpack.c.b16 %v823, %v822
        %v827 = vpack.c.b16 %v825, %v824
        %v831 = vsel %vm612, %v694, 0
        %833 = vmatprep.subr.bf16.mxu0 0
        %834 = vmatpush1.bf16.msra.mxu0 %v826
        %835 = vmatprep.subr.bf16.mxu0 0
        %836 = vmatpush1.bf16.msra.mxu0 %v827
        %837 = vmatprep.subr.bf16.mxu0 0
        %838 = vmatpush1.bf16.msra.mxu0 0
        %839 = vmatprep.subr.bf16.mxu0 0
        %840 = vmatpush1.bf16.msra.mxu0 0
        %841 = vmatprep.subr.bf16.mxu0 0
        %842 = vmatpush1.bf16.msra.mxu0 0
        %843 = vmatprep.subr.bf16.mxu0 0
        %844 = vmatpush1.bf16.msra.mxu0 0
        %845 = vmatprep.subr.bf16.mxu0 0
        %846 = vmatpush1.bf16.msra.mxu0 0
        %847 = vmatprep.subr.bf16.mxu0 0
        %848 = vmatpush1.bf16.msra.mxu0 0
        %849 = vmatprep.subr.bf16.mxu0 0
        %850 = vmatpush1.bf16.msra.mxu0 0
        %851 = vmatprep.subr.bf16.mxu0 0
        %852 = vmatpush1.bf16.msra.mxu0 0
        %853 = vmatprep.subr.bf16.mxu0 0
        %854 = vmatpush1.bf16.msra.mxu0 0
        %855 = vmatprep.subr.bf16.mxu0 0
        %856 = vmatpush1.bf16.msra.mxu0 0
        %857 = vmatprep.subr.bf16.mxu0 0
        %858 = vmatpush1.bf16.msra.mxu0 0
        %859 = vmatprep.subr.bf16.mxu0 0
        %860 = vmatpush1.bf16.msra.mxu0 0
        %861 = vmatprep.subr.bf16.mxu0 0
        %862 = vmatpush1.bf16.msra.mxu0 0
        %863 = vmatprep.subr.bf16.mxu0 0
        %864 = vmatpush1.bf16.msra.mxu0 0
        %865 = vmatprep.mubr.bf16.mxu0 0
        %866 = vmatmul.mubr.bf16.gmra.mrb[0].mxu0 %v831
        %v867 = vpop.f32.mrb[0].mxu0
        %v868 = vadd.f32 0.0, %v867
        %v869 = vpop.f32.mrb[0].mxu0
        %v870 = vpop.f32.mrb[0].mxu0
        %v871 = vadd.f32 0.0, %v870
        %v872 = vpop.f32.mrb[0].mxu0
        %873 = vdwg.mxu0
        %s874 = scalar_lea.vmem %s8, 16
        %v875 = vld [vmem:[%s874] sm:$0xf]
        %v876 = vld [vmem:[%s874 + $0x4] sm:$0xf]
        %v877 = vld [vmem:[%s874 + $0x8] sm:$0xf]
        %v878 = vld [vmem:[%s874 + $0xc] sm:$0xf]
        %v883 = vunpack.c.l.b16 %v875
        %v884 = vunpack.c.l.b16 %v876
        %v885 = vunpack.c.l.b16 %v877
        %v886 = vunpack.c.l.b16 %v878
        %v887 = vpack.c.b16 %v884, %v883
        %v888 = vpack.c.b16 %v886, %v885
        %891 = vmatprep.subr.bf16.mxu0 0
        %892 = vmatpush1.bf16.msra.mxu0 %v887
        %893 = vmatprep.subr.bf16.mxu0 0
        %894 = vmatpush1.bf16.msra.mxu0 %v888
        %895 = vmatprep.subr.bf16.mxu0 0
        %896 = vmatpush1.bf16.msra.mxu0 0
        %897 = vmatprep.subr.bf16.mxu0 0
        %898 = vmatpush1.bf16.msra.mxu0 0
        %899 = vmatprep.subr.bf16.mxu0 0
        %900 = vmatpush1.bf16.msra.mxu0 0
        %901 = vmatprep.subr.bf16.mxu0 0
        %902 = vmatpush1.bf16.msra.mxu0 0
        %903 = vmatprep.subr.bf16.mxu0 0
        %904 = vmatpush1.bf16.msra.mxu0 0
        %905 = vmatprep.subr.bf16.mxu0 0
        %906 = vmatpush1.bf16.msra.mxu0 0
        %907 = vmatprep.subr.bf16.mxu0 0
        %908 = vmatpush1.bf16.msra.mxu0 0
        %909 = vmatprep.subr.bf16.mxu0 0
        %910 = vmatpush1.bf16.msra.mxu0 0
        %911 = vmatprep.subr.bf16.mxu0 0
        %912 = vmatpush1.bf16.msra.mxu0 0
        %913 = vmatprep.subr.bf16.mxu0 0
        %914 = vmatpush1.bf16.msra.mxu0 0
        %915 = vmatprep.subr.bf16.mxu0 0
        %916 = vmatpush1.bf16.msra.mxu0 0
        %917 = vmatprep.subr.bf16.mxu0 0
        %918 = vmatpush1.bf16.msra.mxu0 0
        %919 = vmatprep.subr.bf16.mxu0 0
        %920 = vmatpush1.bf16.msra.mxu0 0
        %921 = vmatprep.subr.bf16.mxu0 0
        %922 = vmatpush1.bf16.msra.mxu0 0
        %923 = vmatprep.mubr.bf16.mxu0 0
        %924 = vmatmul.mubr.bf16.gmra.mrb[0].mxu0 %v712
        %v925 = vpop.f32.mrb[0].mxu0
        %v926 = vadd.f32 0.0, %v925
        %v927 = vpop.f32.mrb[0].mxu0
        %v928 = vpop.f32.mrb[0].mxu0
        %v929 = vpop.f32.mrb[0].mxu0
        %930 = vdwg.mxu0
        %s931 = scalar_lea.vmem %s10, 16
        %v932 = vld [vmem:[%s931] sm:$0xf]
        %v933 = vld [vmem:[%s931 + $0x4] sm:$0xf]
        %v934 = vld [vmem:[%s931 + $0x8] sm:$0xf]
        %v935 = vld [vmem:[%s931 + $0xc] sm:$0xf]
        %v940 = vunpack.c.l.b16 %v932
        %v941 = vunpack.c.l.b16 %v933
        %v942 = vunpack.c.l.b16 %v934
        %v943 = vunpack.c.l.b16 %v935
        %v944 = vpack.c.b16 %v941, %v940
        %v945 = vpack.c.b16 %v943, %v942
        %948 = vmatprep.subr.bf16.mxu0 0
        %949 = vmatpush1.bf16.msra.mxu0 %v944
        %950 = vmatprep.subr.bf16.mxu0 0
        %951 = vmatpush1.bf16.msra.mxu0 %v945
        %952 = vmatprep.subr.bf16.mxu0 0
        %953 = vmatpush1.bf16.msra.mxu0 0
        %954 = vmatprep.subr.bf16.mxu0 0
        %955 = vmatpush1.bf16.msra.mxu0 0
        %956 = vmatprep.subr.bf16.mxu0 0
        %957 = vmatpush1.bf16.msra.mxu0 0
        %958 = vmatprep.subr.bf16.mxu0 0
        %959 = vmatpush1.bf16.msra.mxu0 0
        %960 = vmatprep.subr.bf16.mxu0 0
        %961 = vmatpush1.bf16.msra.mxu0 0
        %962 = vmatprep.subr.bf16.mxu0 0
        %963 = vmatpush1.bf16.msra.mxu0 0
        %964 = vmatprep.subr.bf16.mxu0 0
        %965 = vmatpush1.bf16.msra.mxu0 0
        %966 = vmatprep.subr.bf16.mxu0 0
        %967 = vmatpush1.bf16.msra.mxu0 0
        %968 = vmatprep.subr.bf16.mxu0 0
        %969 = vmatpush1.bf16.msra.mxu0 0
        %970 = vmatprep.subr.bf16.mxu0 0
        %971 = vmatpush1.bf16.msra.mxu0 0
        %972 = vmatprep.subr.bf16.mxu0 0
        %973 = vmatpush1.bf16.msra.mxu0 0
        %974 = vmatprep.subr.bf16.mxu0 0
        %975 = vmatpush1.bf16.msra.mxu0 0
        %976 = vmatprep.subr.bf16.mxu0 0
        %977 = vmatpush1.bf16.msra.mxu0 0
        %978 = vmatprep.subr.bf16.mxu0 0
        %979 = vmatpush1.bf16.msra.mxu0 0
        %980 = vmatprep.mubr.bf16.mxu0 0
        %981 = vmatmul.mubr.bf16.gmra.mrb[0].mxu0 %v771
        %v982 = vpop.f32.mrb[0].mxu0
        %v983 = vadd.f32 0.0, %v982
        %v984 = vpop.f32.mrb[0].mxu0
        %v985 = vpop.f32.mrb[0].mxu0
        %v986 = vadd.f32 0.0, %v985
        %v987 = vpop.f32.mrb[0].mxu0
        %988 = vdwg.mxu0
        %s989 = scalar_lea.vmem %s12, 16
        %v990 = vld [vmem:[%s989] sm:$0xf]
        %v991 = vld [vmem:[%s989 + $0x4] sm:$0xf]
        %v992 = vld [vmem:[%s989 + $0x8] sm:$0xf]
        %v993 = vld [vmem:[%s989 + $0xc] sm:$0xf]
        %v998 = vunpack.c.l.b16 %v990
        %v999 = vunpack.c.l.b16 %v991
        %v1000 = vunpack.c.l.b16 %v992
        %v1001 = vunpack.c.l.b16 %v993
        %v1002 = vpack.c.b16 %v999, %v998
        %v1003 = vpack.c.b16 %v1001, %v1000
        %1006 = vmatprep.subr.bf16.mxu0 0
        %1007 = vmatpush1.bf16.msra.mxu0 %v1002
        %1008 = vmatprep.subr.bf16.mxu0 0
        %1009 = vmatpush1.bf16.msra.mxu0 %v1003
        %1010 = vmatprep.subr.bf16.mxu0 0
        %1011 = vmatpush1.bf16.msra.mxu0 0
        %1012 = vmatprep.subr.bf16.mxu0 0
        %1013 = vmatpush1.bf16.msra.mxu0 0
        %1014 = vmatprep.subr.bf16.mxu0 0
        %1015 = vmatpush1.bf16.msra.mxu0 0
        %1016 = vmatprep.subr.bf16.mxu0 0
        %1017 = vmatpush1.bf16.msra.mxu0 0
        %1018 = vmatprep.subr.bf16.mxu0 0
        %1019 = vmatpush1.bf16.msra.mxu0 0
        %1020 = vmatprep.subr.bf16.mxu0 0
        %1021 = vmatpush1.bf16.msra.mxu0 0
        %1022 = vmatprep.subr.bf16.mxu0 0
        %1023 = vmatpush1.bf16.msra.mxu0 0
        %1024 = vmatprep.subr.bf16.mxu0 0
        %1025 = vmatpush1.bf16.msra.mxu0 0
        %1026 = vmatprep.subr.bf16.mxu0 0
        %1027 = vmatpush1.bf16.msra.mxu0 0
        %1028 = vmatprep.subr.bf16.mxu0 0
        %1029 = vmatpush1.bf16.msra.mxu0 0
        %1030 = vmatprep.subr.bf16.mxu0 0
        %1031 = vmatpush1.bf16.msra.mxu0 0
        %1032 = vmatprep.subr.bf16.mxu0 0
        %1033 = vmatpush1.bf16.msra.mxu0 0
        %1034 = vmatprep.subr.bf16.mxu0 0
        %1035 = vmatpush1.bf16.msra.mxu0 0
        %1036 = vmatprep.subr.bf16.mxu0 0
        %1037 = vmatpush1.bf16.msra.mxu0 0
        %1038 = vmatprep.mubr.bf16.mxu0 0
        %1039 = vmatmul.mubr.bf16.gmra.mrb[0].mxu0 %v831
        %v1040 = vpop.f32.mrb[0].mxu0
        %v1041 = vadd.f32 0.0, %v1040
        %v1042 = vpop.f32.mrb[0].mxu0
        %v1043 = vpop.f32.mrb[0].mxu0
        %v1044 = vadd.f32 0.0, %v1043
        %v1045 = vpop.f32.mrb[0].mxu0
        %1046 = vdwg.mxu0
        %s1047 = scalar_lea.vmem %s8, 32
        %v1048 = vld [vmem:[%s1047] sm:$0xf]
        %v1049 = vld [vmem:[%s1047 + $0x4] sm:$0xf]
        %v1050 = vld [vmem:[%s1047 + $0x8] sm:$0xf]
        %v1051 = vld [vmem:[%s1047 + $0xc] sm:$0xf]
        %v1056 = vunpack.c.l.b16 %v1048
        %v1057 = vunpack.c.l.b16 %v1049
        %v1058 = vunpack.c.l.b16 %v1050
        %v1059 = vunpack.c.l.b16 %v1051
        %v1060 = vpack.c.b16 %v1057, %v1056
        %v1061 = vpack.c.b16 %v1059, %v1058
        %1064 = vmatprep.subr.bf16.mxu0 0
        %1065 = vmatpush1.bf16.msra.mxu0 %v1060
        %1066 = vmatprep.subr.bf16.mxu0 0
        %1067 = vmatpush1.bf16.msra.mxu0 %v1061
        %1068 = vmatprep.subr.bf16.mxu0 0
        %1069 = vmatpush1.bf16.msra.mxu0 0
        %1070 = vmatprep.subr.bf16.mxu0 0
        %1071 = vmatpush1.bf16.msra.mxu0 0
        %1072 = vmatprep.subr.bf16.mxu0 0
        %1073 = vmatpush1.bf16.msra.mxu0 0
        %1074 = vmatprep.subr.bf16.mxu0 0
        %1075 = vmatpush1.bf16.msra.mxu0 0
        %1076 = vmatprep.subr.bf16.mxu0 0
        %1077 = vmatpush1.bf16.msra.mxu0 0
        %1078 = vmatprep.subr.bf16.mxu0 0
        %1079 = vmatpush1.bf16.msra.mxu0 0
        %1080 = vmatprep.subr.bf16.mxu0 0
        %1081 = vmatpush1.bf16.msra.mxu0 0
        %1082 = vmatprep.subr.bf16.mxu0 0
        %1083 = vmatpush1.bf16.msra.mxu0 0
        %1084 = vmatprep.subr.bf16.mxu0 0
        %1085 = vmatpush1.bf16.msra.mxu0 0
        %1086 = vmatprep.subr.bf16.mxu0 0
        %1087 = vmatpush1.bf16.msra.mxu0 0
        %1088 = vmatprep.subr.bf16.mxu0 0
        %1089 = vmatpush1.bf16.msra.mxu0 0
        %1090 = vmatprep.subr.bf16.mxu0 0
        %1091 = vmatpush1.bf16.msra.mxu0 0
        %1092 = vmatprep.subr.bf16.mxu0 0
        %1093 = vmatpush1.bf16.msra.mxu0 0
        %1094 = vmatprep.subr.bf16.mxu0 0
        %1095 = vmatpush1.bf16.msra.mxu0 0
        %1096 = vmatprep.mubr.bf16.mxu0 0
        %1097 = vmatmul.mubr.bf16.gmra.mrb[0].mxu0 %v712
        %v1098 = vpop.f32.mrb[0].mxu0
        %v1099 = vadd.f32 0.0, %v1098
        %v1100 = vpop.f32.mrb[0].mxu0
        %v1101 = vpop.f32.mrb[0].mxu0
        %v1102 = vpop.f32.mrb[0].mxu0
        %1103 = vdwg.mxu0
        %s1104 = scalar_lea.vmem %s10, 32
        %v1105 = vld [vmem:[%s1104] sm:$0xf]
        %v1106 = vld [vmem:[%s1104 + $0x4] sm:$0xf]
        %v1107 = vld [vmem:[%s1104 + $0x8] sm:$0xf]
        %v1108 = vld [vmem:[%s1104 + $0xc] sm:$0xf]
        %v1113 = vunpack.c.l.b16 %v1105
        %v1114 = vunpack.c.l.b16 %v1106
        %v1115 = vunpack.c.l.b16 %v1107
        %v1116 = vunpack.c.l.b16 %v1108
        %v1117 = vpack.c.b16 %v1114, %v1113
        %v1118 = vpack.c.b16 %v1116, %v1115
        %1121 = vmatprep.subr.bf16.mxu0 0
        %1122 = vmatpush1.bf16.msra.mxu0 %v1117
        %1123 = vmatprep.subr.bf16.mxu0 0
        %1124 = vmatpush1.bf16.msra.mxu0 %v1118
        %1125 = vmatprep.subr.bf16.mxu0 0
        %1126 = vmatpush1.bf16.msra.mxu0 0
        %1127 = vmatprep.subr.bf16.mxu0 0
        %1128 = vmatpush1.bf16.msra.mxu0 0
        %1129 = vmatprep.subr.bf16.mxu0 0
        %1130 = vmatpush1.bf16.msra.mxu0 0
        %1131 = vmatprep.subr.bf16.mxu0 0
        %1132 = vmatpush1.bf16.msra.mxu0 0
        %1133 = vmatprep.subr.bf16.mxu0 0
        %1134 = vmatpush1.bf16.msra.mxu0 0
        %1135 = vmatprep.subr.bf16.mxu0 0
        %1136 = vmatpush1.bf16.msra.mxu0 0
        %1137 = vmatprep.subr.bf16.mxu0 0
        %1138 = vmatpush1.bf16.msra.mxu0 0
        %1139 = vmatprep.subr.bf16.mxu0 0
        %1140 = vmatpush1.bf16.msra.mxu0 0
        %1141 = vmatprep.subr.bf16.mxu0 0
        %1142 = vmatpush1.bf16.msra.mxu0 0
        %1143 = vmatprep.subr.bf16.mxu0 0
        %1144 = vmatpush1.bf16.msra.mxu0 0
        %1145 = vmatprep.subr.bf16.mxu0 0
        %1146 = vmatpush1.bf16.msra.mxu0 0
        %1147 = vmatprep.subr.bf16.mxu0 0
        %1148 = vmatpush1.bf16.msra.mxu0 0
        %1149 = vmatprep.subr.bf16.mxu0 0
        %1150 = vmatpush1.bf16.msra.mxu0 0
        %1151 = vmatprep.subr.bf16.mxu0 0
        %1152 = vmatpush1.bf16.msra.mxu0 0
        %1153 = vmatprep.mubr.bf16.mxu0 0
        %1154 = vmatmul.mubr.bf16.gmra.mrb[0].mxu0 %v771
        %v1155 = vpop.f32.mrb[0].mxu0
        %v1156 = vadd.f32 0.0, %v1155
        %v1157 = vpop.f32.mrb[0].mxu0
        %v1158 = vpop.f32.mrb[0].mxu0
        %v1159 = vadd.f32 0.0, %v1158
        %v1160 = vpop.f32.mrb[0].mxu0
        %1161 = vdwg.mxu0
        %s1162 = scalar_lea.vmem %s12, 32
        %v1163 = vld [vmem:[%s1162] sm:$0xf]
        %v1164 = vld [vmem:[%s1162 + $0x4] sm:$0xf]
        %v1165 = vld [vmem:[%s1162 + $0x8] sm:$0xf]
        %v1166 = vld [vmem:[%s1162 + $0xc] sm:$0xf]
        %v1171 = vunpack.c.l.b16 %v1163
        %v1172 = vunpack.c.l.b16 %v1164
        %v1173 = vunpack.c.l.b16 %v1165
        %v1174 = vunpack.c.l.b16 %v1166
        %v1175 = vpack.c.b16 %v1172, %v1171
        %v1176 = vpack.c.b16 %v1174, %v1173
        %1179 = vmatprep.subr.bf16.mxu0 0
        %1180 = vmatpush1.bf16.msra.mxu0 %v1175
        %1181 = vmatprep.subr.bf16.mxu0 0
        %1182 = vmatpush1.bf16.msra.mxu0 %v1176
        %1183 = vmatprep.subr.bf16.mxu0 0
        %1184 = vmatpush1.bf16.msra.mxu0 0
        %1185 = vmatprep.subr.bf16.mxu0 0
        %1186 = vmatpush1.bf16.msra.mxu0 0
        %1187 = vmatprep.subr.bf16.mxu0 0
        %1188 = vmatpush1.bf16.msra.mxu0 0
        %1189 = vmatprep.subr.bf16.mxu0 0
        %1190 = vmatpush1.bf16.msra.mxu0 0
        %1191 = vmatprep.subr.bf16.mxu0 0
        %1192 = vmatpush1.bf16.msra.mxu0 0
        %1193 = vmatprep.subr.bf16.mxu0 0
        %1194 = vmatpush1.bf16.msra.mxu0 0
        %1195 = vmatprep.subr.bf16.mxu0 0
        %1196 = vmatpush1.bf16.msra.mxu0 0
        %1197 = vmatprep.subr.bf16.mxu0 0
        %1198 = vmatpush1.bf16.msra.mxu0 0
        %1199 = vmatprep.subr.bf16.mxu0 0
        %1200 = vmatpush1.bf16.msra.mxu0 0
        %1201 = vmatprep.subr.bf16.mxu0 0
        %1202 = vmatpush1.bf16.msra.mxu0 0
        %1203 = vmatprep.subr.bf16.mxu0 0
        %1204 = vmatpush1.bf16.msra.mxu0 0
        %1205 = vmatprep.subr.bf16.mxu0 0
        %1206 = vmatpush1.bf16.msra.mxu0 0
        %1207 = vmatprep.subr.bf16.mxu0 0
        %1208 = vmatpush1.bf16.msra.mxu0 0
        %1209 = vmatprep.subr.bf16.mxu0 0
        %1210 = vmatpush1.bf16.msra.mxu0 0
        %1211 = vmatprep.mubr.bf16.mxu0 0
        %1212 = vmatmul.mubr.bf16.gmra.mrb[0].mxu0 %v831
        %v1213 = vpop.f32.mrb[0].mxu0
        %v1214 = vadd.f32 0.0, %v1213
        %v1215 = vpop.f32.mrb[0].mxu0
        %v1216 = vpop.f32.mrb[0].mxu0
        %v1217 = vadd.f32 0.0, %v1216
        %v1218 = vpop.f32.mrb[0].mxu0
        %1219 = vdwg.mxu0
        %s1220 = scalar_lea.vmem %s8, 48
        %v1221 = vld [vmem:[%s1220] sm:$0xf]
        %v1222 = vld [vmem:[%s1220 + $0x4] sm:$0xf]
        %v1223 = vld [vmem:[%s1220 + $0x8] sm:$0xf]
        %v1224 = vld [vmem:[%s1220 + $0xc] sm:$0xf]
        %v1229 = vunpack.c.l.b16 %v1221
        %v1230 = vunpack.c.l.b16 %v1222
        %v1231 = vunpack.c.l.b16 %v1223
        %v1232 = vunpack.c.l.b16 %v1224
        %v1233 = vpack.c.b16 %v1230, %v1229
        %v1234 = vpack.c.b16 %v1232, %v1231
        %1237 = vmatprep.subr.bf16.mxu0 0
        %1238 = vmatpush1.bf16.msra.mxu0 %v1233
        %1239 = vmatprep.subr.bf16.mxu0 0
        %1240 = vmatpush1.bf16.msra.mxu0 %v1234
        %1241 = vmatprep.subr.bf16.mxu0 0
        %1242 = vmatpush1.bf16.msra.mxu0 0
        %1243 = vmatprep.subr.bf16.mxu0 0
        %1244 = vmatpush1.bf16.msra.mxu0 0
        %1245 = vmatprep.subr.bf16.mxu0 0
        %1246 = vmatpush1.bf16.msra.mxu0 0
        %1247 = vmatprep.subr.bf16.mxu0 0
        %1248 = vmatpush1.bf16.msra.mxu0 0
        %1249 = vmatprep.subr.bf16.mxu0 0
        %1250 = vmatpush1.bf16.msra.mxu0 0
        %1251 = vmatprep.subr.bf16.mxu0 0
        %1252 = vmatpush1.bf16.msra.mxu0 0
        %1253 = vmatprep.subr.bf16.mxu0 0
        %1254 = vmatpush1.bf16.msra.mxu0 0
        %1255 = vmatprep.subr.bf16.mxu0 0
        %1256 = vmatpush1.bf16.msra.mxu0 0
        %1257 = vmatprep.subr.bf16.mxu0 0
        %1258 = vmatpush1.bf16.msra.mxu0 0
        %1259 = vmatprep.subr.bf16.mxu0 0
        %1260 = vmatpush1.bf16.msra.mxu0 0
        %1261 = vmatprep.subr.bf16.mxu0 0
        %1262 = vmatpush1.bf16.msra.mxu0 0
        %1263 = vmatprep.subr.bf16.mxu0 0
        %1264 = vmatpush1.bf16.msra.mxu0 0
        %1265 = vmatprep.subr.bf16.mxu0 0
        %1266 = vmatpush1.bf16.msra.mxu0 0
        %1267 = vmatprep.subr.bf16.mxu0 0
        %1268 = vmatpush1.bf16.msra.mxu0 0
        %1269 = vmatprep.mubr.bf16.mxu0 0
        %1270 = vmatmul.mubr.bf16.gmra.mrb[0].mxu0 %v712
        %v1271 = vpop.f32.mrb[0].mxu0
        %v1272 = vadd.f32 0.0, %v1271
        %v1273 = vpop.f32.mrb[0].mxu0
        %v1274 = vpop.f32.mrb[0].mxu0
        %v1275 = vpop.f32.mrb[0].mxu0
        %1276 = vdwg.mxu0
        %s1277 = scalar_lea.vmem %s10, 48
        %v1278 = vld [vmem:[%s1277] sm:$0xf]
        %v1279 = vld [vmem:[%s1277 + $0x4] sm:$0xf]
        %v1280 = vld [vmem:[%s1277 + $0x8] sm:$0xf]
        %v1281 = vld [vmem:[%s1277 + $0xc] sm:$0xf]
        %v1286 = vunpack.c.l.b16 %v1278
        %v1287 = vunpack.c.l.b16 %v1279
        %v1288 = vunpack.c.l.b16 %v1280
        %v1289 = vunpack.c.l.b16 %v1281
        %v1290 = vpack.c.b16 %v1287, %v1286
        %v1291 = vpack.c.b16 %v1289, %v1288
        %1294 = vmatprep.subr.bf16.mxu0 0
        %1295 = vmatpush1.bf16.msra.mxu0 %v1290
        %1296 = vmatprep.subr.bf16.mxu0 0
        %1297 = vmatpush1.bf16.msra.mxu0 %v1291
        %1298 = vmatprep.subr.bf16.mxu0 0
        %1299 = vmatpush1.bf16.msra.mxu0 0
        %1300 = vmatprep.subr.bf16.mxu0 0
        %1301 = vmatpush1.bf16.msra.mxu0 0
        %1302 = vmatprep.subr.bf16.mxu0 0
        %1303 = vmatpush1.bf16.msra.mxu0 0
        %1304 = vmatprep.subr.bf16.mxu0 0
        %1305 = vmatpush1.bf16.msra.mxu0 0
        %1306 = vmatprep.subr.bf16.mxu0 0
        %1307 = vmatpush1.bf16.msra.mxu0 0
        %1308 = vmatprep.subr.bf16.mxu0 0
        %1309 = vmatpush1.bf16.msra.mxu0 0
        %1310 = vmatprep.subr.bf16.mxu0 0
        %1311 = vmatpush1.bf16.msra.mxu0 0
        %1312 = vmatprep.subr.bf16.mxu0 0
        %1313 = vmatpush1.bf16.msra.mxu0 0
        %1314 = vmatprep.subr.bf16.mxu0 0
        %1315 = vmatpush1.bf16.msra.mxu0 0
        %1316 = vmatprep.subr.bf16.mxu0 0
        %1317 = vmatpush1.bf16.msra.mxu0 0
        %1318 = vmatprep.subr.bf16.mxu0 0
        %1319 = vmatpush1.bf16.msra.mxu0 0
        %1320 = vmatprep.subr.bf16.mxu0 0
        %1321 = vmatpush1.bf16.msra.mxu0 0
        %1322 = vmatprep.subr.bf16.mxu0 0
        %1323 = vmatpush1.bf16.msra.mxu0 0
        %1324 = vmatprep.subr.bf16.mxu0 0
        %1325 = vmatpush1.bf16.msra.mxu0 0
        %1326 = vmatprep.mubr.bf16.mxu0 0
        %1327 = vmatmul.mubr.bf16.gmra.mrb[0].mxu0 %v771
        %v1328 = vpop.f32.mrb[0].mxu0
        %v1329 = vadd.f32 0.0, %v1328
        %v1330 = vpop.f32.mrb[0].mxu0
        %v1331 = vpop.f32.mrb[0].mxu0
        %v1332 = vadd.f32 0.0, %v1331
        %v1333 = vpop.f32.mrb[0].mxu0
        %1334 = vdwg.mxu0
        %s1335 = scalar_lea.vmem %s12, 48
        %v1336 = vld [vmem:[%s1335] sm:$0xf]
        %v1337 = vld [vmem:[%s1335 + $0x4] sm:$0xf]
        %v1338 = vld [vmem:[%s1335 + $0x8] sm:$0xf]
        %v1339 = vld [vmem:[%s1335 + $0xc] sm:$0xf]
        %v1344 = vunpack.c.l.b16 %v1336
        %v1345 = vunpack.c.l.b16 %v1337
        %v1346 = vunpack.c.l.b16 %v1338
        %v1347 = vunpack.c.l.b16 %v1339
        %v1348 = vpack.c.b16 %v1345, %v1344
        %v1349 = vpack.c.b16 %v1347, %v1346
        %1352 = vmatprep.subr.bf16.mxu0 0
        %1353 = vmatpush1.bf16.msra.mxu0 %v1348
        %1354 = vmatprep.subr.bf16.mxu0 0
        %1355 = vmatpush1.bf16.msra.mxu0 %v1349
        %1356 = vmatprep.subr.bf16.mxu0 0
        %1357 = vmatpush1.bf16.msra.mxu0 0
        %1358 = vmatprep.subr.bf16.mxu0 0
        %1359 = vmatpush1.bf16.msra.mxu0 0
        %1360 = vmatprep.subr.bf16.mxu0 0
        %1361 = vmatpush1.bf16.msra.mxu0 0
        %1362 = vmatprep.subr.bf16.mxu0 0
        %1363 = vmatpush1.bf16.msra.mxu0 0
        %1364 = vmatprep.subr.bf16.mxu0 0
        %1365 = vmatpush1.bf16.msra.mxu0 0
        %1366 = vmatprep.subr.bf16.mxu0 0
        %1367 = vmatpush1.bf16.msra.mxu0 0
        %1368 = vmatprep.subr.bf16.mxu0 0
        %1369 = vmatpush1.bf16.msra.mxu0 0
        %1370 = vmatprep.subr.bf16.mxu0 0
        %1371 = vmatpush1.bf16.msra.mxu0 0
        %1372 = vmatprep.subr.bf16.mxu0 0
        %1373 = vmatpush1.bf16.msra.mxu0 0
        %1374 = vmatprep.subr.bf16.mxu0 0
        %1375 = vmatpush1.bf16.msra.mxu0 0
        %1376 = vmatprep.subr.bf16.mxu0 0
        %1377 = vmatpush1.bf16.msra.mxu0 0
        %1378 = vmatprep.subr.bf16.mxu0 0
        %1379 = vmatpush1.bf16.msra.mxu0 0
        %1380 = vmatprep.subr.bf16.mxu0 0
        %1381 = vmatpush1.bf16.msra.mxu0 0
        %1382 = vmatprep.subr.bf16.mxu0 0
        %1383 = vmatpush1.bf16.msra.mxu0 0
        %1384 = vmatprep.mubr.bf16.mxu0 0
        %1385 = vmatmul.mubr.bf16.gmra.mrb[0].mxu0 %v831
        %v1386 = vpop.f32.mrb[0].mxu0
        %v1387 = vadd.f32 0.0, %v1386
        %v1388 = vpop.f32.mrb[0].mxu0
        %v1389 = vpop.f32.mrb[0].mxu0
        %v1390 = vadd.f32 0.0, %v1389
        %v1391 = vpop.f32.mrb[0].mxu0
        %1392 = vdwg.mxu0
        %v1393 = vld [vmem:[%s9] sm:$0x1]
        %v1394 = vld [vmem:[%s9 + $0x1] sm:$0x1]
        %v1395 = vld [vmem:[%s9 + $0x2] sm:$0x1]
        %v1396 = vld [vmem:[%s9 + $0x3] sm:$0x1]
        %v1401 = vlaneseq
        %v1402 = vshrl.u32 %v1401, 7
        %v1403 = vsub.s32 0, %v1402
        %v1404 = vrot.slane %v1393, %v1403
        %v1405 = vlaneseq
        %v1406 = vshrl.u32 %v1405, 7
        %v1407 = vsub.s32 0, %v1406
        %v1408 = vrot.slane %v1394, %v1407
        %v1409 = vlaneseq
        %v1410 = vshrl.u32 %v1409, 7
        %v1411 = vsub.s32 0, %v1410
        %v1412 = vrot.slane %v1395, %v1411
        %v1413 = vlaneseq
        %v1414 = vshrl.u32 %v1413, 7
        %v1415 = vsub.s32 0, %v1414
        %v1416 = vrot.slane %v1396, %v1415
        %v1421 = vadd.f32 %v749, %v1404
        %v1422 = vadd.f32 %v926, %v1408
        %v1423 = vadd.f32 %v1099, %v1412
        %v1424 = vadd.f32 %v1272, %v1416
        %v1425 = vmul.f32 %v1421, 0.35355338
        %v1426 = vmul.f32 %v1422, 0.35355338
        %v1427 = vmul.f32 %v1423, 0.35355338
        %v1428 = vmul.f32 %v1424, 0.35355338
        %v1429 = vld [vmem:[%s11] sm:$0x1]
        %v1430 = vld [vmem:[%s11 + $0x1] sm:$0x1]
        %v1431 = vld [vmem:[%s11 + $0x2] sm:$0x1]
        %v1432 = vld [vmem:[%s11 + $0x3] sm:$0x1]
        %v1437 = vlaneseq
        %v1438 = vshrl.u32 %v1437, 7
        %v1439 = vsub.s32 0, %v1438
        %v1440 = vrot.slane %v1429, %v1439
        %v1441 = vlaneseq
        %v1442 = vshrl.u32 %v1441, 7
        %v1443 = vsub.s32 0, %v1442
        %v1444 = vrot.slane %v1430, %v1443
        %v1445 = vlaneseq
        %v1446 = vshrl.u32 %v1445, 7
        %v1447 = vsub.s32 0, %v1446
        %v1448 = vrot.slane %v1431, %v1447
        %v1449 = vlaneseq
        %v1450 = vshrl.u32 %v1449, 7
        %v1451 = vsub.s32 0, %v1450
        %v1452 = vrot.slane %v1432, %v1451
        %v1457 = vadd.f32 %v808, %v1440
        %v1458 = vadd.f32 %v811, %v1440
        %v1459 = vadd.f32 %v983, %v1444
        %v1460 = vadd.f32 %v986, %v1444
        %v1461 = vadd.f32 %v1156, %v1448
        %v1462 = vadd.f32 %v1159, %v1448
        %v1463 = vadd.f32 %v1329, %v1452
        %v1464 = vadd.f32 %v1332, %v1452
        %v1465 = vld [vmem:[%s13] sm:$0x1]
        %v1466 = vld [vmem:[%s13 + $0x1] sm:$0x1]
        %v1467 = vld [vmem:[%s13 + $0x2] sm:$0x1]
        %v1468 = vld [vmem:[%s13 + $0x3] sm:$0x1]
        %v1473 = vlaneseq
        %v1474 = vshrl.u32 %v1473, 7
        %v1475 = vsub.s32 0, %v1474
        %v1476 = vrot.slane %v1465, %v1475
        %v1477 = vlaneseq
        %v1478 = vshrl.u32 %v1477, 7
        %v1479 = vsub.s32 0, %v1478
        %v1480 = vrot.slane %v1466, %v1479
        %v1481 = vlaneseq
        %v1482 = vshrl.u32 %v1481, 7
        %v1483 = vsub.s32 0, %v1482
        %v1484 = vrot.slane %v1467, %v1483
        %v1485 = vlaneseq
        %v1486 = vshrl.u32 %v1485, 7
        %v1487 = vsub.s32 0, %v1486
        %v1488 = vrot.slane %v1468, %v1487
        %v1493 = vadd.f32 %v868, %v1476
        %v1494 = vadd.f32 %v871, %v1476
        %v1495 = vadd.f32 %v1041, %v1480
        %v1496 = vadd.f32 %v1044, %v1480
        %v1497 = vadd.f32 %v1214, %v1484
        %v1498 = vadd.f32 %v1217, %v1484
        %v1499 = vadd.f32 %v1387, %v1488
        %v1500 = vadd.f32 %v1390, %v1488
        %v1501 = vpack.c.bf16 %v1425, %v1425
        %v1502 = vpack.c.bf16 %v1426, %v1426
        %v1503 = vpack.c.bf16 %v1427, %v1427
        %v1504 = vpack.c.bf16 %v1428, %v1428
        %v1505 = vpack.c.bf16 %v1458, %v1457
        %v1506 = vpack.c.bf16 %v1460, %v1459
        %v1507 = vpack.c.bf16 %v1462, %v1461
        %v1508 = vpack.c.bf16 %v1464, %v1463
        %vm1509 = vcmask 64512
        %v1511 = vsel %vm1509, %v1501, 0
        %v1514 = vsel %vm1509, %v1505, 0
        %1516 = vmatprep.subr.bf16.mxu0 0
        %1517 = vmatpush1.bf16.xpose.msra.mxu0 %v1514
        %1518 = vmatprep.subr.bf16.mxu0 0
        %1519 = vmatpush1.bf16.xpose.msra.mxu0 0
        %1520 = vmatprep.subr.bf16.mxu0 0
        %1521 = vmatpush1.bf16.xpose.msra.mxu0 0
        %1522 = vmatprep.subr.bf16.mxu0 0
        %1523 = vmatpush1.bf16.xpose.msra.mxu0 0
        %1524 = vmatprep.subr.bf16.mxu0 0
        %1525 = vmatpush1.bf16.xpose.msra.mxu0 0
        %1526 = vmatprep.subr.bf16.mxu0 0
        %1527 = vmatpush1.bf16.xpose.msra.mxu0 0
        %1528 = vmatprep.subr.bf16.mxu0 0
        %1529 = vmatpush1.bf16.xpose.msra.mxu0 0
        %1530 = vmatprep.subr.bf16.mxu0 0
        %1531 = vmatpush1.bf16.xpose.msra.mxu0 0
        %1532 = vmatprep.subr.bf16.mxu0 0
        %1533 = vmatpush1.bf16.xpose.msra.mxu0 0
        %1534 = vmatprep.subr.bf16.mxu0 0
        %1535 = vmatpush1.bf16.xpose.msra.mxu0 0
        %1536 = vmatprep.subr.bf16.mxu0 0
        %1537 = vmatpush1.bf16.xpose.msra.mxu0 0
        %1538 = vmatprep.subr.bf16.mxu0 0
        %1539 = vmatpush1.bf16.xpose.msra.mxu0 0
        %1540 = vmatprep.subr.bf16.mxu0 0
        %1541 = vmatpush1.bf16.xpose.msra.mxu0 0
        %1542 = vmatprep.subr.bf16.mxu0 0
        %1543 = vmatpush1.bf16.xpose.msra.mxu0 0
        %1544 = vmatprep.subr.bf16.mxu0 0
        %1545 = vmatpush1.bf16.xpose.msra.mxu0 0
        %1546 = vmatprep.subr.bf16.mxu0 0
        %1547 = vmatpush1.bf16.xpose.msra.mxu0 0
        %1548 = vmatprep.mubr.bf16.mxu0 0
        %1549 = vmatmul.mubr.bf16.gmra.mrb[0].mxu0 %v1511
        %v1550 = vpop.f32.mrb[0].mxu0
        %v1551 = vadd.f32 %v609, %v1550
        %v1552 = vpop.f32.mrb[0].mxu0
        %v1553 = vpop.f32.mrb[0].mxu0
        %v1554 = vpop.f32.mrb[0].mxu0
        %1555 = vdwg.mxu0
        %v1557 = vsel %vm1509, %v1502, 0
        %v1560 = vsel %vm1509, %v1506, 0
        %1562 = vmatprep.subr.bf16.mxu0 0
        %1563 = vmatpush1.bf16.xpose.msra.mxu0 %v1560
        %1564 = vmatprep.subr.bf16.mxu0 0
        %1565 = vmatpush1.bf16.xpose.msra.mxu0 0
        %1566 = vmatprep.subr.bf16.mxu0 0
        %1567 = vmatpush1.bf16.xpose.msra.mxu0 0
        %1568 = vmatprep.subr.bf16.mxu0 0
        %1569 = vmatpush1.bf16.xpose.msra.mxu0 0
        %1570 = vmatprep.subr.bf16.mxu0 0
        %1571 = vmatpush1.bf16.xpose.msra.mxu0 0
        %1572 = vmatprep.subr.bf16.mxu0 0
        %1573 = vmatpush1.bf16.xpose.msra.mxu0 0
        %1574 = vmatprep.subr.bf16.mxu0 0
        %1575 = vmatpush1.bf16.xpose.msra.mxu0 0
        %1576 = vmatprep.subr.bf16.mxu0 0
        %1577 = vmatpush1.bf16.xpose.msra.mxu0 0
        %1578 = vmatprep.subr.bf16.mxu0 0
        %1579 = vmatpush1.bf16.xpose.msra.mxu0 0
        %1580 = vmatprep.subr.bf16.mxu0 0
        %1581 = vmatpush1.bf16.xpose.msra.mxu0 0
        %1582 = vmatprep.subr.bf16.mxu0 0
        %1583 = vmatpush1.bf16.xpose.msra.mxu0 0
        %1584 = vmatprep.subr.bf16.mxu0 0
        %1585 = vmatpush1.bf16.xpose.msra.mxu0 0
        %1586 = vmatprep.subr.bf16.mxu0 0
        %1587 = vmatpush1.bf16.xpose.msra.mxu0 0
        %1588 = vmatprep.subr.bf16.mxu0 0
        %1589 = vmatpush1.bf16.xpose.msra.mxu0 0
        %1590 = vmatprep.subr.bf16.mxu0 0
        %1591 = vmatpush1.bf16.xpose.msra.mxu0 0
        %1592 = vmatprep.subr.bf16.mxu0 0
        %1593 = vmatpush1.bf16.xpose.msra.mxu0 0
        %1594 = vmatprep.mubr.bf16.mxu0 0
        %1595 = vmatmul.mubr.bf16.gmra.mrb[0].mxu0 %v1557
        %v1596 = vpop.f32.mrb[0].mxu0
        %v1597 = vadd.f32 %v609, %v1596
        %v1598 = vpop.f32.mrb[0].mxu0
        %v1599 = vpop.f32.mrb[0].mxu0
        %v1600 = vpop.f32.mrb[0].mxu0
        %1601 = vdwg.mxu0
        %v1603 = vsel %vm1509, %v1503, 0
        %v1606 = vsel %vm1509, %v1507, 0
        %1608 = vmatprep.subr.bf16.mxu0 0
        %1609 = vmatpush1.bf16.xpose.msra.mxu0 %v1606
        %1610 = vmatprep.subr.bf16.mxu0 0
        %1611 = vmatpush1.bf16.xpose.msra.mxu0 0
        %1612 = vmatprep.subr.bf16.mxu0 0
        %1613 = vmatpush1.bf16.xpose.msra.mxu0 0
        %1614 = vmatprep.subr.bf16.mxu0 0
        %1615 = vmatpush1.bf16.xpose.msra.mxu0 0
        %1616 = vmatprep.subr.bf16.mxu0 0
        %1617 = vmatpush1.bf16.xpose.msra.mxu0 0
        %1618 = vmatprep.subr.bf16.mxu0 0
        %1619 = vmatpush1.bf16.xpose.msra.mxu0 0
        %1620 = vmatprep.subr.bf16.mxu0 0
        %1621 = vmatpush1.bf16.xpose.msra.mxu0 0
        %1622 = vmatprep.subr.bf16.mxu0 0
        %1623 = vmatpush1.bf16.xpose.msra.mxu0 0
        %1624 = vmatprep.subr.bf16.mxu0 0
        %1625 = vmatpush1.bf16.xpose.msra.mxu0 0
        %1626 = vmatprep.subr.bf16.mxu0 0
        %1627 = vmatpush1.bf16.xpose.msra.mxu0 0
        %1628 = vmatprep.subr.bf16.mxu0 0
        %1629 = vmatpush1.bf16.xpose.msra.mxu0 0
        %1630 = vmatprep.subr.bf16.mxu0 0
        %1631 = vmatpush1.bf16.xpose.msra.mxu0 0
        %1632 = vmatprep.subr.bf16.mxu0 0
        %1633 = vmatpush1.bf16.xpose.msra.mxu0 0
        %1634 = vmatprep.subr.bf16.mxu0 0
        %1635 = vmatpush1.bf16.xpose.msra.mxu0 0
        %1636 = vmatprep.subr.bf16.mxu0 0
        %1637 = vmatpush1.bf16.xpose.msra.mxu0 0
        %1638 = vmatprep.subr.bf16.mxu0 0
        %1639 = vmatpush1.bf16.xpose.msra.mxu0 0
        %1640 = vmatprep.mubr.bf16.mxu0 0
        %1641 = vmatmul.mubr.bf16.gmra.mrb[0].mxu0 %v1603
        %v1642 = vpop.f32.mrb[0].mxu0
        %v1643 = vadd.f32 %v609, %v1642
        %v1644 = vpop.f32.mrb[0].mxu0
        %v1645 = vpop.f32.mrb[0].mxu0
        %v1646 = vpop.f32.mrb[0].mxu0
        %1647 = vdwg.mxu0
        %v1649 = vsel %vm1509, %v1504, 0
        %v1652 = vsel %vm1509, %v1508, 0
        %1654 = vmatprep.subr.bf16.mxu0 0
        %1655 = vmatpush1.bf16.xpose.msra.mxu0 %v1652
        %1656 = vmatprep.subr.bf16.mxu0 0
        %1657 = vmatpush1.bf16.xpose.msra.mxu0 0
        %1658 = vmatprep.subr.bf16.mxu0 0
        %1659 = vmatpush1.bf16.xpose.msra.mxu0 0
        %1660 = vmatprep.subr.bf16.mxu0 0
        %1661 = vmatpush1.bf16.xpose.msra.mxu0 0
        %1662 = vmatprep.subr.bf16.mxu0 0
        %1663 = vmatpush1.bf16.xpose.msra.mxu0 0
        %1664 = vmatprep.subr.bf16.mxu0 0
        %1665 = vmatpush1.bf16.xpose.msra.mxu0 0
        %1666 = vmatprep.subr.bf16.mxu0 0
        %1667 = vmatpush1.bf16.xpose.msra.mxu0 0
        %1668 = vmatprep.subr.bf16.mxu0 0
        %1669 = vmatpush1.bf16.xpose.msra.mxu0 0
        %1670 = vmatprep.subr.bf16.mxu0 0
        %1671 = vmatpush1.bf16.xpose.msra.mxu0 0
        %1672 = vmatprep.subr.bf16.mxu0 0
        %1673 = vmatpush1.bf16.xpose.msra.mxu0 0
        %1674 = vmatprep.subr.bf16.mxu0 0
        %1675 = vmatpush1.bf16.xpose.msra.mxu0 0
        %1676 = vmatprep.subr.bf16.mxu0 0
        %1677 = vmatpush1.bf16.xpose.msra.mxu0 0
        %1678 = vmatprep.subr.bf16.mxu0 0
        %1679 = vmatpush1.bf16.xpose.msra.mxu0 0
        %1680 = vmatprep.subr.bf16.mxu0 0
        %1681 = vmatpush1.bf16.xpose.msra.mxu0 0
        %1682 = vmatprep.subr.bf16.mxu0 0
        %1683 = vmatpush1.bf16.xpose.msra.mxu0 0
        %1684 = vmatprep.subr.bf16.mxu0 0
        %1685 = vmatpush1.bf16.xpose.msra.mxu0 0
        %1686 = vmatprep.mubr.bf16.mxu0 0
        %1687 = vmatmul.mubr.bf16.gmra.mrb[0].mxu0 %v1649
        %v1688 = vpop.f32.mrb[0].mxu0
        %v1689 = vadd.f32 %v609, %v1688
        %v1690 = vpop.f32.mrb[0].mxu0
        %v1691 = vpop.f32.mrb[0].mxu0
        %v1692 = vpop.f32.mrb[0].mxu0
        %1693 = vdwg.mxu0
        %vm1694 = vcmask 130048
        %v1695 = vsel %vm1694, %v1551, -inf
        %1696 = vmax.xlane.f32.xlu0 %v1695
        %v1697 = vpop.xlane.xlu0 %1696
        %v1698 = vsel %vm1694, %v1597, -inf
        %1699 = vmax.xlane.f32.xlu0 %v1698
        %v1700 = vpop.xlane.xlu0 %1699
        %v1701 = vsel %vm1694, %v1643, -inf
        %1702 = vmax.xlane.f32.xlu0 %v1701
        %v1703 = vpop.xlane.xlu0 %1702
        %v1704 = vsel %vm1694, %v1689, -inf
        %1705 = vmax.xlane.f32.xlu0 %v1704
        %v1706 = vpop.xlane.xlu0 %1705
        %v1707 = vsub.f32 %v1551, %v1697
        %v1708 = vsub.f32 %v1597, %v1700
        %v1709 = vsub.f32 %v1643, %v1703
        %v1710 = vsub.f32 %v1689, %v1706
        %v1711 = vmul.f32 %v1707, 1.442695
        %v1712 = vpow.pop %v1711
        %v1713 = vmul.f32 %v1708, 1.442695
        %v1714 = vpow.pop %v1713
        %v1715 = vmul.f32 %v1709, 1.442695
        %v1716 = vpow.pop %v1715
        %v1717 = vmul.f32 %v1710, 1.442695
        %v1718 = vpow.pop %v1717
        %v1719 = vsel %vm1694, %v1712, 0.0
        %1720 = vadd.xlane.f32.xlu0 %v1719
        %v1721 = vpop.xlane.xlu0 %1720
        %v1722 = vsel %vm1694, %v1714, 0.0
        %1723 = vadd.xlane.f32.xlu0 %v1722
        %v1724 = vpop.xlane.xlu0 %1723
        %v1725 = vsel %vm1694, %v1716, 0.0
        %1726 = vadd.xlane.f32.xlu0 %v1725
        %v1727 = vpop.xlane.xlu0 %1726
        %v1728 = vsel %vm1694, %v1718, 0.0
        %1729 = vadd.xlane.f32.xlu0 %v1728
        %v1730 = vpop.xlane.xlu0 %1729
        %v1731 = vrcp.pop %v1721
        %v1732 = vrcp.pop %v1724
        %v1733 = vrcp.pop %v1727
        %v1734 = vrcp.pop %v1730
        %v1735 = vmul.f32 %v1712, %v1731
        %v1736 = vmul.f32 %v1714, %v1732
        %v1737 = vmul.f32 %v1716, %v1733
        %v1738 = vmul.f32 %v1718, %v1734
        %v1739 = vpack.c.bf16 %v1735, %v1735
        %v1740 = vpack.c.bf16 %v1736, %v1736
        %v1741 = vpack.c.bf16 %v1737, %v1737
        %v1742 = vpack.c.bf16 %v1738, %v1738
        %v1743 = vpack.c.bf16 %v1494, %v1493
        %v1744 = vpack.c.bf16 %v1496, %v1495
        %v1745 = vpack.c.bf16 %v1498, %v1497
        %v1746 = vpack.c.bf16 %v1500, %v1499
        %v1748 = vsel %vm1694, %v1739, 0
        %1750 = vmatprep.subr.bf16.mxu0 0
        %1751 = vmatpush1.bf16.msra.mxu0 %v1743
        %1752 = vmatprep.subr.bf16.mxu0 0
        %1753 = vmatpush1.bf16.msra.mxu0 0
        %1754 = vmatprep.subr.bf16.mxu0 0
        %1755 = vmatpush1.bf16.msra.mxu0 0
        %1756 = vmatprep.subr.bf16.mxu0 0
        %1757 = vmatpush1.bf16.msra.mxu0 0
        %1758 = vmatprep.subr.bf16.mxu0 0
        %1759 = vmatpush1.bf16.msra.mxu0 0
        %1760 = vmatprep.subr.bf16.mxu0 0
        %1761 = vmatpush1.bf16.msra.mxu0 0
        %1762 = vmatprep.subr.bf16.mxu0 0
        %1763 = vmatpush1.bf16.msra.mxu0 0
        %1764 = vmatprep.subr.bf16.mxu0 0
        %1765 = vmatpush1.bf16.msra.mxu0 0
        %1766 = vmatprep.subr.bf16.mxu0 0
        %1767 = vmatpush1.bf16.msra.mxu0 0
        %1768 = vmatprep.subr.bf16.mxu0 0
        %1769 = vmatpush1.bf16.msra.mxu0 0
        %1770 = vmatprep.subr.bf16.mxu0 0
        %1771 = vmatpush1.bf16.msra.mxu0 0
        %1772 = vmatprep.subr.bf16.mxu0 0
        %1773 = vmatpush1.bf16.msra.mxu0 0
        %1774 = vmatprep.subr.bf16.mxu0 0
        %1775 = vmatpush1.bf16.msra.mxu0 0
        %1776 = vmatprep.subr.bf16.mxu0 0
        %1777 = vmatpush1.bf16.msra.mxu0 0
        %1778 = vmatprep.subr.bf16.mxu0 0
        %1779 = vmatpush1.bf16.msra.mxu0 0
        %1780 = vmatprep.subr.bf16.mxu0 0
        %1781 = vmatpush1.bf16.msra.mxu0 0
        %1782 = vmatprep.mubr.bf16.mxu0 0
        %1783 = vmatmul.mubr.bf16.gmra.mrb[0].mxu0 %v1748
        %v1784 = vpop.f32.mrb[0].mxu0
        %v1785 = vadd.f32 0.0, %v1784
        %v1786 = vpop.f32.mrb[0].mxu0
        %v1787 = vpop.f32.mrb[0].mxu0
        %v1788 = vpop.f32.mrb[0].mxu0
        %1789 = vdwg.mxu0
        %v1791 = vsel %vm1694, %v1740, 0
        %1793 = vmatprep.subr.bf16.mxu0 0
        %1794 = vmatpush1.bf16.msra.mxu0 %v1744
        %1795 = vmatprep.subr.bf16.mxu0 0
        %1796 = vmatpush1.bf16.msra.mxu0 0
        %1797 = vmatprep.subr.bf16.mxu0 0
        %1798 = vmatpush1.bf16.msra.mxu0 0
        %1799 = vmatprep.subr.bf16.mxu0 0
        %1800 = vmatpush1.bf16.msra.mxu0 0
        %1801 = vmatprep.subr.bf16.mxu0 0
        %1802 = vmatpush1.bf16.msra.mxu0 0
        %1803 = vmatprep.subr.bf16.mxu0 0
        %1804 = vmatpush1.bf16.msra.mxu0 0
        %1805 = vmatprep.subr.bf16.mxu0 0
        %1806 = vmatpush1.bf16.msra.mxu0 0
        %1807 = vmatprep.subr.bf16.mxu0 0
        %1808 = vmatpush1.bf16.msra.mxu0 0
        %1809 = vmatprep.subr.bf16.mxu0 0
        %1810 = vmatpush1.bf16.msra.mxu0 0
        %1811 = vmatprep.subr.bf16.mxu0 0
        %1812 = vmatpush1.bf16.msra.mxu0 0
        %1813 = vmatprep.subr.bf16.mxu0 0
        %1814 = vmatpush1.bf16.msra.mxu0 0
        %1815 = vmatprep.subr.bf16.mxu0 0
        %1816 = vmatpush1.bf16.msra.mxu0 0
        %1817 = vmatprep.subr.bf16.mxu0 0
        %1818 = vmatpush1.bf16.msra.mxu0 0
        %1819 = vmatprep.subr.bf16.mxu0 0
        %1820 = vmatpush1.bf16.msra.mxu0 0
        %1821 = vmatprep.subr.bf16.mxu0 0
        %1822 = vmatpush1.bf16.msra.mxu0 0
        %1823 = vmatprep.subr.bf16.mxu0 0
        %1824 = vmatpush1.bf16.msra.mxu0 0
        %1825 = vmatprep.mubr.bf16.mxu0 0
        %1826 = vmatmul.mubr.bf16.gmra.mrb[0].mxu0 %v1791
        %v1827 = vpop.f32.mrb[0].mxu0
        %v1828 = vadd.f32 0.0, %v1827
        %v1829 = vpop.f32.mrb[0].mxu0
        %v1830 = vpop.f32.mrb[0].mxu0
        %v1831 = vpop.f32.mrb[0].mxu0
        %1832 = vdwg.mxu0
        %v1834 = vsel %vm1694, %v1741, 0
        %1836 = vmatprep.subr.bf16.mxu0 0
        %1837 = vmatpush1.bf16.msra.mxu0 %v1745
        %1838 = vmatprep.subr.bf16.mxu0 0
        %1839 = vmatpush1.bf16.msra.mxu0 0
        %1840 = vmatprep.subr.bf16.mxu0 0
        %1841 = vmatpush1.bf16.msra.mxu0 0
        %1842 = vmatprep.subr.bf16.mxu0 0
        %1843 = vmatpush1.bf16.msra.mxu0 0
        %1844 = vmatprep.subr.bf16.mxu0 0
        %1845 = vmatpush1.bf16.msra.mxu0 0
        %1846 = vmatprep.subr.bf16.mxu0 0
        %1847 = vmatpush1.bf16.msra.mxu0 0
        %1848 = vmatprep.subr.bf16.mxu0 0
        %1849 = vmatpush1.bf16.msra.mxu0 0
        %1850 = vmatprep.subr.bf16.mxu0 0
        %1851 = vmatpush1.bf16.msra.mxu0 0
        %1852 = vmatprep.subr.bf16.mxu0 0
        %1853 = vmatpush1.bf16.msra.mxu0 0
        %1854 = vmatprep.subr.bf16.mxu0 0
        %1855 = vmatpush1.bf16.msra.mxu0 0
        %1856 = vmatprep.subr.bf16.mxu0 0
        %1857 = vmatpush1.bf16.msra.mxu0 0
        %1858 = vmatprep.subr.bf16.mxu0 0
        %1859 = vmatpush1.bf16.msra.mxu0 0
        %1860 = vmatprep.subr.bf16.mxu0 0
        %1861 = vmatpush1.bf16.msra.mxu0 0
        %1862 = vmatprep.subr.bf16.mxu0 0
        %1863 = vmatpush1.bf16.msra.mxu0 0
        %1864 = vmatprep.subr.bf16.mxu0 0
        %1865 = vmatpush1.bf16.msra.mxu0 0
        %1866 = vmatprep.subr.bf16.mxu0 0
        %1867 = vmatpush1.bf16.msra.mxu0 0
        %1868 = vmatprep.mubr.bf16.mxu0 0
        %1869 = vmatmul.mubr.bf16.gmra.mrb[0].mxu0 %v1834
        %v1870 = vpop.f32.mrb[0].mxu0
        %v1871 = vadd.f32 0.0, %v1870
        %v1872 = vpop.f32.mrb[0].mxu0
        %v1873 = vpop.f32.mrb[0].mxu0
        %v1874 = vpop.f32.mrb[0].mxu0
        %1875 = vdwg.mxu0
        %v1877 = vsel %vm1694, %v1742, 0
        %1879 = vmatprep.subr.bf16.mxu0 0
        %1880 = vmatpush1.bf16.msra.mxu0 %v1746
        %1881 = vmatprep.subr.bf16.mxu0 0
        %1882 = vmatpush1.bf16.msra.mxu0 0
        %1883 = vmatprep.subr.bf16.mxu0 0
        %1884 = vmatpush1.bf16.msra.mxu0 0
        %1885 = vmatprep.subr.bf16.mxu0 0
        %1886 = vmatpush1.bf16.msra.mxu0 0
        %1887 = vmatprep.subr.bf16.mxu0 0
        %1888 = vmatpush1.bf16.msra.mxu0 0
        %1889 = vmatprep.subr.bf16.mxu0 0
        %1890 = vmatpush1.bf16.msra.mxu0 0
        %1891 = vmatprep.subr.bf16.mxu0 0
        %1892 = vmatpush1.bf16.msra.mxu0 0
        %1893 = vmatprep.subr.bf16.mxu0 0
        %1894 = vmatpush1.bf16.msra.mxu0 0
        %1895 = vmatprep.subr.bf16.mxu0 0
        %1896 = vmatpush1.bf16.msra.mxu0 0
        %1897 = vmatprep.subr.bf16.mxu0 0
        %1898 = vmatpush1.bf16.msra.mxu0 0
        %1899 = vmatprep.subr.bf16.mxu0 0
        %1900 = vmatpush1.bf16.msra.mxu0 0
        %1901 = vmatprep.subr.bf16.mxu0 0
        %1902 = vmatpush1.bf16.msra.mxu0 0
        %1903 = vmatprep.subr.bf16.mxu0 0
        %1904 = vmatpush1.bf16.msra.mxu0 0
        %1905 = vmatprep.subr.bf16.mxu0 0
        %1906 = vmatpush1.bf16.msra.mxu0 0
        %1907 = vmatprep.subr.bf16.mxu0 0
        %1908 = vmatpush1.bf16.msra.mxu0 0
        %1909 = vmatprep.subr.bf16.mxu0 0
        %1910 = vmatpush1.bf16.msra.mxu0 0
        %1911 = vmatprep.mubr.bf16.mxu0 0
        %1912 = vmatmul.mubr.bf16.gmra.mrb[0].mxu0 %v1877
        %v1913 = vpop.f32.mrb[0].mxu0
        %v1914 = vadd.f32 0.0, %v1913
        %v1915 = vpop.f32.mrb[0].mxu0
        %v1916 = vpop.f32.mrb[0].mxu0
        %v1917 = vpop.f32.mrb[0].mxu0
        %1918 = vdwg.mxu0
        %v1919 = vpack.c.bf16 %v1785, %v1785
        %v1920 = vpack.c.bf16 %v1828, %v1828
        %v1921 = vpack.c.bf16 %v1871, %v1871
        %v1922 = vpack.c.bf16 %v1914, %v1914
        %v1923 = vld [vmem:[%s14] sm:$0xf]
        %v1924 = vld [vmem:[%s14 + $0x4] sm:$0xf]
        %v1925 = vld [vmem:[%s14 + $0x8] sm:$0xf]
        %v1926 = vld [vmem:[%s14 + $0xc] sm:$0xf]
        %v1928 = vsel %vm1509, %v1919, 0
        %vm1930 = vcmask 1043456
        %v1932 = vsel %vm1930, %v1923, 0
        %1934 = vmatprep.subr.bf16.mxu0 0
        %1935 = vmatpush1.bf16.msra.mxu0 %v1932
        %1936 = vmatprep.subr.bf16.mxu0 0
        %1937 = vmatpush1.bf16.msra.mxu0 0
        %1938 = vmatprep.subr.bf16.mxu0 0
        %1939 = vmatpush1.bf16.msra.mxu0 0
        %1940 = vmatprep.subr.bf16.mxu0 0
        %1941 = vmatpush1.bf16.msra.mxu0 0
        %1942 = vmatprep.subr.bf16.mxu0 0
        %1943 = vmatpush1.bf16.msra.mxu0 0
        %1944 = vmatprep.subr.bf16.mxu0 0
        %1945 = vmatpush1.bf16.msra.mxu0 0
        %1946 = vmatprep.subr.bf16.mxu0 0
        %1947 = vmatpush1.bf16.msra.mxu0 0
        %1948 = vmatprep.subr.bf16.mxu0 0
        %1949 = vmatpush1.bf16.msra.mxu0 0
        %1950 = vmatprep.subr.bf16.mxu0 0
        %1951 = vmatpush1.bf16.msra.mxu0 0
        %1952 = vmatprep.subr.bf16.mxu0 0
        %1953 = vmatpush1.bf16.msra.mxu0 0
        %1954 = vmatprep.subr.bf16.mxu0 0
        %1955 = vmatpush1.bf16.msra.mxu0 0
        %1956 = vmatprep.subr.bf16.mxu0 0
        %1957 = vmatpush1.bf16.msra.mxu0 0
        %1958 = vmatprep.subr.bf16.mxu0 0
        %1959 = vmatpush1.bf16.msra.mxu0 0
        %1960 = vmatprep.subr.bf16.mxu0 0
        %1961 = vmatpush1.bf16.msra.mxu0 0
        %1962 = vmatprep.subr.bf16.mxu0 0
        %1963 = vmatpush1.bf16.msra.mxu0 0
        %1964 = vmatprep.subr.bf16.mxu0 0
        %1965 = vmatpush1.bf16.msra.mxu0 0
        %1966 = vmatprep.mubr.bf16.mxu0 0
        %1967 = vmatmul.mubr.bf16.gmra.mrb[0].mxu0 %v1928
        %v1968 = vpop.f32.mrb[0].mxu0
        %v1969 = vadd.f32 0.0, %v1968
        %v1970 = vpop.f32.mrb[0].mxu0
        %v1971 = vpop.f32.mrb[0].mxu0
        %v1972 = vpop.f32.mrb[0].mxu0
        %1973 = vdwg.mxu0
        %v1975 = vsel %vm1509, %v1920, 0
        %v1978 = vsel %vm1930, %v1924, 0
        %1980 = vmatprep.subr.bf16.mxu0 0
        %1981 = vmatpush1.bf16.msra.mxu0 %v1978
        %1982 = vmatprep.subr.bf16.mxu0 0
        %1983 = vmatpush1.bf16.msra.mxu0 0
        %1984 = vmatprep.subr.bf16.mxu0 0
        %1985 = vmatpush1.bf16.msra.mxu0 0
        %1986 = vmatprep.subr.bf16.mxu0 0
        %1987 = vmatpush1.bf16.msra.mxu0 0
        %1988 = vmatprep.subr.bf16.mxu0 0
        %1989 = vmatpush1.bf16.msra.mxu0 0
        %1990 = vmatprep.subr.bf16.mxu0 0
        %1991 = vmatpush1.bf16.msra.mxu0 0
        %1992 = vmatprep.subr.bf16.mxu0 0
        %1993 = vmatpush1.bf16.msra.mxu0 0
        %1994 = vmatprep.subr.bf16.mxu0 0
        %1995 = vmatpush1.bf16.msra.mxu0 0
        %1996 = vmatprep.subr.bf16.mxu0 0
        %1997 = vmatpush1.bf16.msra.mxu0 0
        %1998 = vmatprep.subr.bf16.mxu0 0
        %1999 = vmatpush1.bf16.msra.mxu0 0
        %2000 = vmatprep.subr.bf16.mxu0 0
        %2001 = vmatpush1.bf16.msra.mxu0 0
        %2002 = vmatprep.subr.bf16.mxu0 0
        %2003 = vmatpush1.bf16.msra.mxu0 0
        %2004 = vmatprep.subr.bf16.mxu0 0
        %2005 = vmatpush1.bf16.msra.mxu0 0
        %2006 = vmatprep.subr.bf16.mxu0 0
        %2007 = vmatpush1.bf16.msra.mxu0 0
        %2008 = vmatprep.subr.bf16.mxu0 0
        %2009 = vmatpush1.bf16.msra.mxu0 0
        %2010 = vmatprep.subr.bf16.mxu0 0
        %2011 = vmatpush1.bf16.msra.mxu0 0
        %2012 = vmatprep.mubr.bf16.mxu0 0
        %2013 = vmatmul.mubr.bf16.gmra.mrb[0].mxu0 %v1975
        %v2014 = vpop.f32.mrb[0].mxu0
        %v2015 = vadd.f32 0.0, %v2014
        %v2016 = vpop.f32.mrb[0].mxu0
        %v2017 = vpop.f32.mrb[0].mxu0
        %v2018 = vpop.f32.mrb[0].mxu0
        %2019 = vdwg.mxu0
        %v2021 = vsel %vm1509, %v1921, 0
        %v2024 = vsel %vm1930, %v1925, 0
        %2026 = vmatprep.subr.bf16.mxu0 0
        %2027 = vmatpush1.bf16.msra.mxu0 %v2024
        %2028 = vmatprep.subr.bf16.mxu0 0
        %2029 = vmatpush1.bf16.msra.mxu0 0
        %2030 = vmatprep.subr.bf16.mxu0 0
        %2031 = vmatpush1.bf16.msra.mxu0 0
        %2032 = vmatprep.subr.bf16.mxu0 0
        %2033 = vmatpush1.bf16.msra.mxu0 0
        %2034 = vmatprep.subr.bf16.mxu0 0
        %2035 = vmatpush1.bf16.msra.mxu0 0
        %2036 = vmatprep.subr.bf16.mxu0 0
        %2037 = vmatpush1.bf16.msra.mxu0 0
        %2038 = vmatprep.subr.bf16.mxu0 0
        %2039 = vmatpush1.bf16.msra.mxu0 0
        %2040 = vmatprep.subr.bf16.mxu0 0
        %2041 = vmatpush1.bf16.msra.mxu0 0
        %2042 = vmatprep.subr.bf16.mxu0 0
        %2043 = vmatpush1.bf16.msra.mxu0 0
        %2044 = vmatprep.subr.bf16.mxu0 0
        %2045 = vmatpush1.bf16.msra.mxu0 0
        %2046 = vmatprep.subr.bf16.mxu0 0
        %2047 = vmatpush1.bf16.msra.mxu0 0
        %2048 = vmatprep.subr.bf16.mxu0 0
        %2049 = vmatpush1.bf16.msra.mxu0 0
        %2050 = vmatprep.subr.bf16.mxu0 0
        %2051 = vmatpush1.bf16.msra.mxu0 0
        %2052 = vmatprep.subr.bf16.mxu0 0
        %2053 = vmatpush1.bf16.msra.mxu0 0
        %2054 = vmatprep.subr.bf16.mxu0 0
        %2055 = vmatpush1.bf16.msra.mxu0 0
        %2056 = vmatprep.subr.bf16.mxu0 0
        %2057 = vmatpush1.bf16.msra.mxu0 0
        %2058 = vmatprep.mubr.bf16.mxu0 0
        %2059 = vmatmul.mubr.bf16.gmra.mrb[0].mxu0 %v2021
        %v2060 = vpop.f32.mrb[0].mxu0
        %v2061 = vadd.f32 0.0, %v2060
        %v2062 = vpop.f32.mrb[0].mxu0
        %v2063 = vpop.f32.mrb[0].mxu0
        %v2064 = vpop.f32.mrb[0].mxu0
        %2065 = vdwg.mxu0
        %v2067 = vsel %vm1509, %v1922, 0
        %v2070 = vsel %vm1930, %v1926, 0
        %2072 = vmatprep.subr.bf16.mxu0 0
        %2073 = vmatpush1.bf16.msra.mxu0 %v2070
        %2074 = vmatprep.subr.bf16.mxu0 0
        %2075 = vmatpush1.bf16.msra.mxu0 0
        %2076 = vmatprep.subr.bf16.mxu0 0
        %2077 = vmatpush1.bf16.msra.mxu0 0
        %2078 = vmatprep.subr.bf16.mxu0 0
        %2079 = vmatpush1.bf16.msra.mxu0 0
        %2080 = vmatprep.subr.bf16.mxu0 0
        %2081 = vmatpush1.bf16.msra.mxu0 0
        %2082 = vmatprep.subr.bf16.mxu0 0
        %2083 = vmatpush1.bf16.msra.mxu0 0
        %2084 = vmatprep.subr.bf16.mxu0 0
        %2085 = vmatpush1.bf16.msra.mxu0 0
        %2086 = vmatprep.subr.bf16.mxu0 0
        %2087 = vmatpush1.bf16.msra.mxu0 0
        %2088 = vmatprep.subr.bf16.mxu0 0
        %2089 = vmatpush1.bf16.msra.mxu0 0
        %2090 = vmatprep.subr.bf16.mxu0 0
        %2091 = vmatpush1.bf16.msra.mxu0 0
        %2092 = vmatprep.subr.bf16.mxu0 0
        %2093 = vmatpush1.bf16.msra.mxu0 0
        %2094 = vmatprep.subr.bf16.mxu0 0
        %2095 = vmatpush1.bf16.msra.mxu0 0
        %2096 = vmatprep.subr.bf16.mxu0 0
        %2097 = vmatpush1.bf16.msra.mxu0 0
        %2098 = vmatprep.subr.bf16.mxu0 0
        %2099 = vmatpush1.bf16.msra.mxu0 0
        %2100 = vmatprep.subr.bf16.mxu0 0
        %2101 = vmatpush1.bf16.msra.mxu0 0
        %2102 = vmatprep.subr.bf16.mxu0 0
        %2103 = vmatpush1.bf16.msra.mxu0 0
        %2104 = vmatprep.mubr.bf16.mxu0 0
        %2105 = vmatmul.mubr.bf16.gmra.mrb[0].mxu0 %v2067
        %v2106 = vpop.f32.mrb[0].mxu0
        %v2107 = vadd.f32 0.0, %v2106
        %v2108 = vpop.f32.mrb[0].mxu0
        %v2109 = vpop.f32.mrb[0].mxu0
        %v2110 = vpop.f32.mrb[0].mxu0
        %2111 = vdwg.mxu0
        %v2112 = vsel %vm612, %v1969, 0.0
        %v2113 = vsel %vm612, %v2015, 0.0
        %v2114 = vadd.f32 %v2112, %v2113
        %v2115 = vsel %vm612, %v2061, 0.0
        %v2116 = vadd.f32 %v2114, %v2115
        %v2117 = vsel %vm612, %v2107, 0.0
        %v2118 = vadd.f32 %v2116, %v2117
        %v2119 = vld [vmem:[%s15] sm:$0x1]
        %v2121 = vlaneseq
        %v2122 = vshrl.u32 %v2121, 7
        %v2123 = vsub.s32 0, %v2122
        %v2124 = vrot.slane %v2119, %v2123
        %v2126 = vadd.f32 %v2118, %v2124
        %v2127 = vld [vmem:[%s16] sm:$0x1]
        %v2128 = vld [vmem:[%s17] sm:$0x1]
        %v2129 = vsel %vm612, %v2126, 0.0
        %2130 = vadd.xlane.f32.xlu0 %v2129
        %v2131 = vpop.xlane.xlu0 %2130
        %v2132 = vmul.f32 %v2131, %v619
        %v2133 = vsub.f32 %v2126, %v2132
        %v2134 = vmul.f32 %v2133, %v2133
        %v2135 = vsel %vm612, %v2134, 0.0
        %2136 = vadd.xlane.f32.xlu0 %v2135
        %v2137 = vpop.xlane.xlu0 %2136
        %v2138 = vmul.f32 %v2137, %v619
        %v2139 = vadd.f32 %v2138, 1e-06
        %v2140 = vrsqrt.pop %v2139
        %v2141 = vmul.f32 %v2133, %v2140
        %v2143 = vlaneseq
        %v2144 = vshrl.u32 %v2143, 7
        %v2145 = vsub.s32 0, %v2144
        %v2146 = vrot.slane %v2127, %v2145
        %v2148 = vmul.f32 %v2141, %v2146
        %v2150 = vlaneseq
        %v2151 = vshrl.u32 %v2150, 7
        %v2152 = vsub.s32 0, %v2151
        %v2153 = vrot.slane %v2128, %v2152
        %v2155 = vadd.f32 %v2148, %v2153
        %v2156 = vpack.c.bf16 %v2155, %v2155
        %v2157 = vld [vmem:[%s18] sm:$0xf]
        %v2158 = vld [vmem:[%s18 + $0x4] sm:$0xf]
        %v2159 = vld [vmem:[%s18 + $0x8] sm:$0xf]
        %v2160 = vld [vmem:[%s18 + $0xc] sm:$0xf]
        %v2165 = vunpack.c.l.b16 %v2157
        %v2166 = vunpack.c.l.b16 %v2158
        %v2167 = vunpack.c.l.b16 %v2159
        %v2168 = vunpack.c.l.b16 %v2160
        %v2169 = vpack.c.b16 %v2166, %v2165
        %v2170 = vpack.c.b16 %v2168, %v2167
        %v2174 = vsel %vm612, %v2156, 0
        %2176 = vmatprep.subr.bf16.mxu0 0
        %2177 = vmatpush1.bf16.msra.mxu0 %v2169
        %2178 = vmatprep.subr.bf16.mxu0 0
        %2179 = vmatpush1.bf16.msra.mxu0 %v2170
        %2180 = vmatprep.subr.bf16.mxu0 0
        %2181 = vmatpush1.bf16.msra.mxu0 0
        %2182 = vmatprep.subr.bf16.mxu0 0
        %2183 = vmatpush1.bf16.msra.mxu0 0
        %2184 = vmatprep.subr.bf16.mxu0 0
        %2185 = vmatpush1.bf16.msra.mxu0 0
        %2186 = vmatprep.subr.bf16.mxu0 0
        %2187 = vmatpush1.bf16.msra.mxu0 0
        %2188 = vmatprep.subr.bf16.mxu0 0
        %2189 = vmatpush1.bf16.msra.mxu0 0
        %2190 = vmatprep.subr.bf16.mxu0 0
        %2191 = vmatpush1.bf16.msra.mxu0 0
        %2192 = vmatprep.subr.bf16.mxu0 0
        %2193 = vmatpush1.bf16.msra.mxu0 0
        %2194 = vmatprep.subr.bf16.mxu0 0
        %2195 = vmatpush1.bf16.msra.mxu0 0
        %2196 = vmatprep.subr.bf16.mxu0 0
        %2197 = vmatpush1.bf16.msra.mxu0 0
        %2198 = vmatprep.subr.bf16.mxu0 0
        %2199 = vmatpush1.bf16.msra.mxu0 0
        %2200 = vmatprep.subr.bf16.mxu0 0
        %2201 = vmatpush1.bf16.msra.mxu0 0
        %2202 = vmatprep.subr.bf16.mxu0 0
        %2203 = vmatpush1.bf16.msra.mxu0 0
        %2204 = vmatprep.subr.bf16.mxu0 0
        %2205 = vmatpush1.bf16.msra.mxu0 0
        %2206 = vmatprep.subr.bf16.mxu0 0
        %2207 = vmatpush1.bf16.msra.mxu0 0
        %2208 = vmatprep.mubr.bf16.mxu0 0
        %2209 = vmatmul.mubr.bf16.gmra.mrb[0].mxu0 %v2174
        %v2210 = vpop.f32.mrb[0].mxu0
        %v2211 = vadd.f32 0.0, %v2210
        %v2212 = vpop.f32.mrb[0].mxu0
        %v2213 = vpop.f32.mrb[0].mxu0
        %v2214 = vpop.f32.mrb[0].mxu0
        %2215 = vdwg.mxu0
        %2216 = vst.msk [vmem:[%s590] sm:$0xff] %vm612, %v2211
        %s2217 = sand.u32 %s435, 1
        %s2218 = scalar_lea.sflag [#allocation5], %s2217
        %s2219 = sand.u32 %s435, 1
        %s2220 = smul.addr %s2219, 8
        %s2221 = scalar_lea.vmem [#allocation4], %s2220
        // Predicated region
        $region93: #{tpu_custom_call.1} parent=91 // pred_check
          %p2222 = pneg %p445
        $region94: #{tpu_custom_call.1} parent=91 // pred_check_branch
          %2224 = sbr.rel (%p2222) target = $region96
        $region95: #{tpu_custom_call.1} parent=91 // pred_region
          %s2226 = ssub.s32 128, 128
          %2227 = vsyncadd %s2218, %s2226
          %s2228 = smul.addr %s39, 128
          %s2229 = scalar_lea.hbm %s19, %s2228
          %s2231 = sshll.u32 %s2221, 4
          %s2232 = int_to_ptr.vmem [resolvable:$true] %s2231
          %2234 = dma.vmem_to_hbm [thread:$0]  %s2232, 128, %s2229, %s2218
        $region96: #{tpu_custom_call.1} parent=91 // pred_fallthru
          _
      $region92: #{tpu_custom_call.1} parent=5 // pred_fallthru
        _
      %p2235 = scmp.le.s32.totalorder 2, %s34
      // Predicated region
      $region97: #{tpu_custom_call.1} parent=5 // pred_check
        %p2236 = pneg %p2235
      $region98: #{tpu_custom_call.1} parent=5 // pred_check_branch
        %2238 = sbr.rel (%p2236) target = $region100
      $region99: #{tpu_custom_call.1} parent=5 // pred_region
        %s2239 = ssub.s32 %s34, 2
        // Predicated region
        $region101: #{tpu_custom_call.1} parent=99 // pred_check
          %p2240 = pneg %p451
        $region102: #{tpu_custom_call.1} parent=99 // pred_check_branch
          %2242 = sbr.rel (%p2240) target = $region104
        $region103: #{tpu_custom_call.1} parent=99 // pred_region
          %s2243 = sand.u32 %s436, 1
          %s2244 = scalar_lea.sflag [#allocation5], %s2243
          %s2245 = sand.u32 %s436, 1
          %s2246 = smul.addr %s2245, 8
          %s2247 = scalar_lea.vmem [#allocation4], %s2246
          %2248 = dma.done %s2244, 128
        $region104: #{tpu_custom_call.1} parent=99 // pred_fallthru
          _
      $region100: #{tpu_custom_call.1} parent=5 // pred_fallthru
        _
    $region6: #{tpu_custom_call.1} parent=1 // loop_footer
      %s38 = sadd.s32 1, %s34
    $region7: #{tpu_custom_call.1} parent=1 // loop_footer_branch
      %33 = sbr.rel target = $region3
    $region8: #{tpu_custom_call.1} parent=1 // loop_exit
      _
    %2249 = vsyncpa [#allocation5], 1
    %s2250 = scalar_lea.sflag [#allocation5], 1
    %2251 = vsyncpa %s2250, 1

</llo_original>
